<compile_context>
chip_gen: v7x
topology: tpu7x:2x2x1
jax: 0.10.0
libtpu: 0.0.40
codegen_flags: <defaults>
</compile_context>

<pallas_src>
import functools
import math

import jax
import jax.numpy as jnp
from jax.experimental import pallas as pl
from jax.experimental.pallas import tpu as pltpu


# ----------------------------------------------------------------------------
# Helpers
# ----------------------------------------------------------------------------
def _pick_v_tile(n, m, h, elt_bytes, max_tile=2048, budget_bytes=8 * 1024 * 1024):
    """Pick the V (vertex) tile: a multiple of 128 sized so the double-buffered
    streamed operands (phi row/col block + W1/W2 row/col block) stay well under
    the scoped-VMEM defaults (16/32 MiB) and v7x's 64 MiB physical VMEM."""
    if n <= 256:
        return n, n                      # single grid step, block == full array
    per_v = (m + h + 16) * elt_bytes     # bytes streamed per vertex per kernel
    tv = budget_bytes // (2 * per_v)     # /2: double buffering
    tv = int(max(128, min(max_tile, tv)))
    tv = min(tv, ((n + 127) // 128) * 128)
    tv = max(128, (tv // 128) * 128)
    n_pad = ((n + tv - 1) // tv) * tv
    return tv, n_pad


def _per_batch_conv(v, w3, b3, w4, b4, batch):
    """Per-vertex 'conv' (fdim=3 -> C -> 3, ReLU in between) applied
    independently per batch on the stacked (batch*3 [+pad], L) layout.
    Weights are shared across batches: a handful of tiny dots instead of the
    old O(B^2) kron block-diagonal matmul."""
    f32 = jnp.float32
    rows = []
    for b in range(batch):   # static unroll; B is small for mesh autoencoders
        vb = v[3 * b:3 * (b + 1), :]                                          # (3, L)
        t = jnp.maximum(jnp.dot(w3, vb, preferred_element_type=f32) + b3, 0.0)  # (C, L)
        rows.append(jnp.dot(w4, t, preferred_element_type=f32) + b4)            # (3, L)
    out = jnp.concatenate(rows, axis=0)
    pad = v.shape[0] - 3 * batch
    if pad:
        out = jnp.concatenate([out, jnp.zeros((pad, v.shape[1]), f32)], axis=0)
    return out


# ----------------------------------------------------------------------------
# Kernel 1: encoder (SkipBlockD) + decoder front half, V-reduction grid.
# Layout: features-on-sublanes (batch*3 padded to 8), vertices-on-lanes.
# ----------------------------------------------------------------------------
def _encoder_kernel(x_ref, phid_ref, w1d_ref, b1d_ref, w2d_ref, b2d_ref,
                    w3d_ref, b3d_ref, w4d_ref, b4d_ref,
                    w3u_ref, b3u_ref, w4u_ref, b4u_ref,
                    w1u_ref, b1u_ref, wts_ref,
                    z_enc_ref, h_u_ref,
                    acc_z, acc_h, *, batch):
    f32 = jnp.float32
    k = pl.program_id(0)

    @pl.when(k == 0)
    def _init():
        acc_z[...] = jnp.zeros_like(acc_z)
        acc_h[...] = jnp.zeros_like(acc_h)

    # Streamed reduction over the vertex axis (bf16 operands, f32 accumulate).
    x = x_ref[...]                                                     # (B3p, tV)
    acc_z[...] += jnp.dot(x, phid_ref[...], preferred_element_type=f32)   # z^T
    acc_h[...] += jnp.dot(x, w1d_ref[...], preferred_element_type=f32)    # l1(x^T)

    @pl.when(k == pl.num_programs(0) - 1)
    def _finalize():
        # Scalar skip-mix weights (SMEM): [w0_down, w1_down, w1_up].
        w0d = wts_ref[0]
        w1d = wts_ref[1]
        w1u = wts_ref[2]
        cw0d = 1.0 - w0d
        cw1d = 1.0 - w1d
        cw1u = 1.0 - w1u

        zd = acc_z[...]                                                # (B3p, M)

        # ---- encoder: y = l2(ReLU(l1(x^T))), skip, conv(l3/l4), skip ----
        h = jnp.maximum(acc_h[...] + b1d_ref[...], 0.0)
        y = jnp.dot(h.astype(w2d_ref.dtype), w2d_ref[...],
                    preferred_element_type=f32) + b2d_ref[...]
        y = cw0d * y + w0d * zd
        y = _per_batch_conv(y, w3d_ref[...], b3d_ref[...],
                            w4d_ref[...], b4d_ref[...], batch)
        z_enc = cw1d * y + w1d * zd                                    # (B3p, M)

        # ---- decoder front: conv(l3/l4), skip, h_u = ReLU(l1_u(.)) ----
        t = _per_batch_conv(z_enc, w3u_ref[...], b3u_ref[...],
                            w4u_ref[...], b4u_ref[...], batch)
        t = cw1u * t + w1u * z_enc
        h_u = jnp.maximum(jnp.dot(t.astype(w1u_ref.dtype), w1u_ref[...],
                                  preferred_element_type=f32) + b1u_ref[...], 0.0)

        z_enc_ref[...] = z_enc.astype(z_enc_ref.dtype)
        h_u_ref[...] = h_u.astype(h_u_ref.dtype)


# ----------------------------------------------------------------------------
# Kernel 2: decoder streaming half, parallel grid over output V tiles.
# ----------------------------------------------------------------------------
def _decoder_kernel(h_ref, z_ref, w2u_ref, b2u_ref, phiu_ref, w0u_ref, out_ref):
    f32 = jnp.float32
    w0u = w0u_ref[0]
    cw0u = 1.0 - w0u
    y2 = jnp.dot(h_ref[...], w2u_ref[...], preferred_element_type=f32) + b2u_ref[...]
    zu = jnp.dot(z_ref[...], phiu_ref[...], preferred_element_type=f32)
    out_ref[...] = (cw0u * y2 + w0u * zu).astype(out_ref.dtype)        # (B3p, tV)


# ----------------------------------------------------------------------------
# Wrapper: layout prep (transpose, sublane/lane padding, bf16 casts) + 2 calls.
# ----------------------------------------------------------------------------
def sdl_skip_forward(x, params_down, params_up, *,
                     compute_dtype=jnp.bfloat16, max_v_tile=2048):
    B, N, fdim = x.shape
    assert fdim == 3
    pd, pu = params_down, params_up
    M = pd["phi"].shape[0]
    H = pd["W1"].shape[1]
    C = pd["W3"].shape[1]

    B3 = B * fdim
    B3p = ((B3 + 7) // 8) * 8                       # pad sublane rows to 8
    elt = jnp.dtype(compute_dtype).itemsize
    tV, Np = _pick_v_tile(N, M, H, elt, max_tile=max_v_tile)
    nV = Np // tV

    # features-on-sublanes, vertices-on-lanes; batch folded onto sublanes
    xT = jnp.transpose(x, (0, 2, 1)).reshape(B3, N)
    xT = jnp.pad(xT, ((0, B3p - B3), (0, Np - N))).astype(compute_dtype)

    # --- streamed (V-sized) operands: bf16, V padded to a tile multiple ---
    phidT = jnp.pad(pd["phi"].T, ((0, Np - N), (0, 0))).astype(compute_dtype)  # (Np, M)
    W1d = jnp.pad(pd["W1"], ((0, Np - N), (0, 0))).astype(compute_dtype)       # (Np, H)
    W2u = jnp.pad(pu["W2"], ((0, 0), (0, Np - N))).astype(compute_dtype)       # (H, Np)
    b2u = jnp.pad(pu["b2"], ((0, 0), (0, Np - N)))                             # (1, Np)
    phiuT = jnp.pad(pu["phi"].T, ((0, 0), (0, Np - N))).astype(compute_dtype)  # (M, Np)

    # --- small resident operands ---
    b1d, b2d = pd["b1"], pd["b2"]                       # (1, H), (1, M) f32
    W2d = pd["W2"].astype(compute_dtype)                # (H, M)
    W1u = pu["W1"].astype(compute_dtype)                # (M, H)
    b1u = pu["b1"]                                      # (1, H)
    W3dT, b3d = pd["W3"].T, pd["b3"].reshape(C, 1)      # (C, 3), (C, 1)
    W4dT, b4d = pd["W4"].T, pd["b4"].reshape(3, 1)      # (3, C), (3, 1)
    W3uT, b3u = pu["W3"].T, pu["b3"].reshape(C, 1)
    W4uT, b4u = pu["W4"].T, pu["b4"].reshape(3, 1)

    # skip-mix scalars (SMEM): encoder kernel uses [w0_down, w1_down, w1_up];
    # decoder kernel uses [w0_up].
    wts_enc = jnp.concatenate([pd["wts"][0:2], pu["wts"][1:2]]).astype(jnp.float32)
    w0u_arr = pu["wts"][0:1].astype(jnp.float32)

    smem_spec = pl.BlockSpec(memory_space=pltpu.MemorySpace.SMEM)

    # -------------------- kernel 1: encoder (V reduction) --------------------
    z_enc, h_u = pl.pallas_call(
        functools.partial(_encoder_kernel, batch=B),
        out_shape=(jax.ShapeDtypeStruct((B3p, M), compute_dtype),
                   jax.ShapeDtypeStruct((B3p, H), compute_dtype)),
        grid_spec=pltpu.PrefetchScalarGridSpec(
            num_scalar_prefetch=0,
            grid=(nV,),
            in_specs=[
                pl.BlockSpec((B3p, tV), lambda k: (0, k)),   # x^T    (streamed)
                pl.BlockSpec((tV, M), lambda k: (k, 0)),     # phi_d^T (streamed)
                pl.BlockSpec((tV, H), lambda k: (k, 0)),     # W1_d    (streamed)
                pl.BlockSpec((1, H), lambda k: (0, 0)),      # b1_d    (resident)
                pl.BlockSpec((H, M), lambda k: (0, 0)),      # W2_d
                pl.BlockSpec((1, M), lambda k: (0, 0)),      # b2_d
                pl.BlockSpec((C, 3), lambda k: (0, 0)),      # W3_d^T
                pl.BlockSpec((C, 1), lambda k: (0, 0)),      # b3_d
                pl.BlockSpec((3, C), lambda k: (0, 0)),      # W4_d^T
                pl.BlockSpec((3, 1), lambda k: (0, 0)),      # b4_d
                pl.BlockSpec((C, 3), lambda k: (0, 0)),      # W3_u^T
                pl.BlockSpec((C, 1), lambda k: (0, 0)),      # b3_u
                pl.BlockSpec((3, C), lambda k: (0, 0)),      # W4_u^T
                pl.BlockSpec((3, 1), lambda k: (0, 0)),      # b4_u
                pl.BlockSpec((M, H), lambda k: (0, 0)),      # W1_u
                pl.BlockSpec((1, H), lambda k: (0, 0)),      # b1_u
                smem_spec,                                   # skip-mix scalars
            ],
            out_specs=(pl.BlockSpec((B3p, M), lambda k: (0, 0)),
                       pl.BlockSpec((B3p, H), lambda k: (0, 0))),
            scratch_shapes=[pltpu.VMEM((B3p, M), jnp.float32),
                            pltpu.VMEM((B3p, H), jnp.float32)],
        ),
        compiler_params=pltpu.CompilerParams(dimension_semantics=("arbitrary",)),
    )(xT, phidT, W1d, b1d, W2d, b2d, W3dT, b3d, W4dT, b4d,
      W3uT, b3u, W4uT, b4u, W1u, b1u, wts_enc)

    # -------------------- kernel 2: decoder (V parallel) ---------------------
    outT = pl.pallas_call(
        _decoder_kernel,
        out_shape=jax.ShapeDtypeStruct((B3p, Np), x.dtype),
        grid_spec=pltpu.PrefetchScalarGridSpec(
            num_scalar_prefetch=0,
            grid=(nV,),
            in_specs=[
                pl.BlockSpec((B3p, H), lambda j: (0, 0)),    # h_u     (resident)
                pl.BlockSpec((B3p, M), lambda j: (0, 0)),    # z_enc   (resident)
                pl.BlockSpec((H, tV), lambda j: (0, j)),     # W2_u    (streamed)
                pl.BlockSpec((1, tV), lambda j: (0, j)),     # b2_u    (streamed)
                pl.BlockSpec((M, tV), lambda j: (0, j)),     # phi_u^T (streamed)
                smem_spec,                                   # [w0_up]
            ],
            out_specs=pl.BlockSpec((B3p, tV), lambda j: (0, j)),  # lane-dense
        ),
        compiler_params=pltpu.CompilerParams(dimension_semantics=("parallel",)),
    )(h_u, z_enc, W2u, b2u, phiuT, w0u_arr)

    # single XLA-side layout restore: drop padding, (B*3, N) -> (B, N, 3)
    out = outT[:B3, :N].reshape(B, fdim, N)
    return jnp.transpose(out, (0, 2, 1))


# ----------------------------------------------------------------------------
# Pure-JAX references (mirror the torch ops 1:1) for correctness checking.
# ----------------------------------------------------------------------------
def ref_skip_block_d(x, p):
    z = jnp.einsum("mn,bnf->bmf", p["phi"], x)
    xt = jnp.transpose(x, (0, 2, 1))
    h = jnp.maximum(xt @ p["W1"] + p["b1"][0], 0.0)
    y = h @ p["W2"] + p["b2"][0]
    y = jnp.transpose(y, (0, 2, 1))
    w0, w1s = p["wts"][0], p["wts"][1]
    y = (1.0 - w0) * y + w0 * z
    t = jnp.maximum(y @ p["W3"] + p["b3"][0], 0.0)
    y = t @ p["W4"] + p["b4"][0]
    return (1.0 - w1s) * y + w1s * z


def ref_skip_block_u(x, p):
    w0, w1s = p["wts"][0], p["wts"][1]
    t = jnp.maximum(x @ p["W3"] + p["b3"][0], 0.0)
    y = t @ p["W4"] + p["b4"][0]
    y = (1.0 - w1s) * y + w1s * x
    yt = jnp.transpose(y, (0, 2, 1))
    h = jnp.maximum(yt @ p["W1"] + p["b1"][0], 0.0)
    y2 = h @ p["W2"] + p["b2"][0]
    y2 = jnp.transpose(y2, (0, 2, 1))
    z = jnp.einsum("nm,bmf->bnf", p["phi"], x)
    return (1.0 - w0) * y2 + w0 * z


def _round_params(p, dtype):
    """bf16-round the operands the kernel streams in bf16 (precision contract)."""
    q = lambda a: a.astype(dtype).astype(jnp.float32)
    out = dict(p)
    for k in ("phi", "W1", "W2"):
        out[k] = q(p[k])
    return out


# ----------------------------------------------------------------------------
# Deterministic parameter construction (synthetic; xavier-uniform style)
# ----------------------------------------------------------------------------
def _xavier_uniform(key, fan_in, fan_out, shape):
    bound = math.sqrt(6.0 / (fan_in + fan_out))
    return jax.random.uniform(key, shape, jnp.float32, -bound, bound)


def _make_linear(key, fan_in, fan_out):
    kw, kb = jax.random.split(key)
    w = _xavier_uniform(kw, fan_in, fan_out, (fan_in, fan_out))  # (in, out)
    bb = 1.0 / math.sqrt(fan_in)
    b = jax.random.uniform(kb, (1, fan_out), jnp.float32, -bb, bb)
    return w, b


def _make_block_params(key, phi, in_ch, out_ch, hidden, conv_size, prior_coef):
    k1, k2, k3, k4 = jax.random.split(key, 4)
    W1, b1 = _make_linear(k1, in_ch, hidden)        # l1
    W2, b2 = _make_linear(k2, hidden, out_ch)       # l2
    W3, b3 = _make_linear(k3, 3, conv_size)         # l3
    W4, b4 = _make_linear(k4, conv_size, 3)         # l4
    wts = jnp.full((2,), prior_coef, jnp.float32)   # self.weights
    return dict(phi=phi, W1=W1, b1=b1, W2=W2, b2=b2,
                W3=W3, b3=b3, W4=W4, b4=b4, wts=wts)


if __name__ == "__main__":
    B, N, M, HIDDEN, CONV = 2, 16, 8, 32, 8
    PRIOR_COEF = 0.5

    key = jax.random.PRNGKey(0)
    k_ev, k_x, k_d, k_u = jax.random.split(key, 4)

    # eig_vecs (N, N) orthonormal basis; nb_freq = [M]
    eig_vecs, _ = jnp.linalg.qr(jax.random.normal(k_ev, (N, N), jnp.float32))
    phi_down = eig_vecs[:, :M].T          # Spectral_M_down[0] = phi^T, (M, N)
    phi_up = phi_down.T                   # up block uses its transpose, (N, M)

    params_down = _make_block_params(k_d, phi_down, N, M, HIDDEN, CONV, PRIOR_COEF)
    params_up = _make_block_params(k_u, phi_up, M, N, HIDDEN, CONV, PRIOR_COEF)

    x = jax.random.normal(k_x, (B, N, 3), jnp.float32)

    # Production path: bf16 streamed operands + f32 accumulation.
    fwd_bf16 = jax.jit(functools.partial(sdl_skip_forward, compute_dtype=jnp.bfloat16))
    out_bf16 = jax.block_until_ready(fwd_bf16(x, params_down, params_up))

    # Full-f32 fallback path.
    fwd_f32 = jax.jit(functools.partial(sdl_skip_forward, compute_dtype=jnp.float32))
    out_f32 = jax.block_until_ready(fwd_f32(x, params_down, params_up))

    ref_f32 = ref_skip_block_u(ref_skip_block_d(x, params_down), params_up)
    x_q = x.astype(jnp.bfloat16).astype(jnp.float32)
    ref_bf = ref_skip_block_u(
        ref_skip_block_d(x_q, _round_params(params_down, jnp.bfloat16)),
        _round_params(params_up, jnp.bfloat16))

    assert out_bf16.shape == (B, N, 3) and out_f32.shape == (B, N, 3)
    assert jnp.allclose(out_f32, ref_f32, atol=2e-2, rtol=2e-2), "f32 mismatch"
    assert jnp.allclose(out_bf16, ref_bf, atol=2e-2, rtol=2e-2), "bf16 mismatch"

    print("KERNEL_OK")
</pallas_src>

<mosaic_0001>
module attributes {stable_mosaic.version = 11 : i64} {
  func.func @_encoder_kernel(%arg0: i32, %arg1: memref<8x16xbf16, #tpu.memory_space<vmem>>, %arg2: memref<16x8xbf16, #tpu.memory_space<vmem>>, %arg3: memref<16x32xbf16, #tpu.memory_space<vmem>>, %arg4: memref<1x32xf32, #tpu.memory_space<vmem>>, %arg5: memref<32x8xbf16, #tpu.memory_space<vmem>>, %arg6: memref<1x8xf32, #tpu.memory_space<vmem>>, %arg7: memref<8x3xf32, #tpu.memory_space<vmem>>, %arg8: memref<8x1xf32, #tpu.memory_space<vmem>>, %arg9: memref<3x8xf32, #tpu.memory_space<vmem>>, %arg10: memref<3x1xf32, #tpu.memory_space<vmem>>, %arg11: memref<8x3xf32, #tpu.memory_space<vmem>>, %arg12: memref<8x1xf32, #tpu.memory_space<vmem>>, %arg13: memref<3x8xf32, #tpu.memory_space<vmem>>, %arg14: memref<3x1xf32, #tpu.memory_space<vmem>>, %arg15: memref<8x32xbf16, #tpu.memory_space<vmem>>, %arg16: memref<1x32xf32, #tpu.memory_space<vmem>>, %arg17: memref<3xf32, #tpu.memory_space<smem>>, %arg18: memref<8x8xbf16, #tpu.memory_space<vmem>>, %arg19: memref<8x32xbf16, #tpu.memory_space<vmem>>, %arg20: memref<8x8xf32, #tpu.memory_space<vmem>>, %arg21: memref<8x32xf32, #tpu.memory_space<vmem>>) attributes {dimension_semantics = [#tpu.dimension_semantics<arbitrary>], iteration_bounds = array<i64: 1>, scalar_prefetch = 0 : i64, scratch_operands = 2 : i64, tpu.core_type = #tpu.core_type<tc>, window_params = [{transform_indices = @transform_0, window_bounds = array<i64: 8, 16>}, {transform_indices = @transform_1, window_bounds = array<i64: 16, 8>}, {transform_indices = @transform_2, window_bounds = array<i64: 16, 32>}, {pipeline_mode = #tpu.pipeline_mode<synchronous>, transform_indices = @transform_3, window_bounds = array<i64: 1, 32>}, {pipeline_mode = #tpu.pipeline_mode<synchronous>, transform_indices = @transform_4, window_bounds = array<i64: 32, 8>}, {pipeline_mode = #tpu.pipeline_mode<synchronous>, transform_indices = @transform_5, window_bounds = array<i64: 1, 8>}, {pipeline_mode = #tpu.pipeline_mode<synchronous>, transform_indices = @transform_6, window_bounds = array<i64: 8, 3>}, {pipeline_mode = #tpu.pipeline_mode<synchronous>, transform_indices = @transform_7, window_bounds = array<i64: 8, 1>}, {pipeline_mode = #tpu.pipeline_mode<synchronous>, transform_indices = @transform_8, window_bounds = array<i64: 3, 8>}, {pipeline_mode = #tpu.pipeline_mode<synchronous>, transform_indices = @transform_9, window_bounds = array<i64: 3, 1>}, {pipeline_mode = #tpu.pipeline_mode<synchronous>, transform_indices = @transform_10, window_bounds = array<i64: 8, 3>}, {pipeline_mode = #tpu.pipeline_mode<synchronous>, transform_indices = @transform_11, window_bounds = array<i64: 8, 1>}, {pipeline_mode = #tpu.pipeline_mode<synchronous>, transform_indices = @transform_12, window_bounds = array<i64: 3, 8>}, {pipeline_mode = #tpu.pipeline_mode<synchronous>, transform_indices = @transform_13, window_bounds = array<i64: 3, 1>}, {pipeline_mode = #tpu.pipeline_mode<synchronous>, transform_indices = @transform_14, window_bounds = array<i64: 8, 32>}, {pipeline_mode = #tpu.pipeline_mode<synchronous>, transform_indices = @transform_15, window_bounds = array<i64: 1, 32>}, {transform_indices = @transform_16, window_bounds = array<i64: 3>}, {pipeline_mode = #tpu.pipeline_mode<synchronous>, transform_indices = @transform_17, window_bounds = array<i64: 8, 8>}, {pipeline_mode = #tpu.pipeline_mode<synchronous>, transform_indices = @transform_18, window_bounds = array<i64: 8, 32>}]} {
    %c0_i32 = arith.constant 0 : i32
    %0 = arith.cmpi eq, %arg0, %c0_i32 : i32
    %1 = arith.extui %0 : i1 to i32
    %c0_i32_0 = arith.constant 0 : i32
    %2 = arith.cmpi ne, %1, %c0_i32_0 : i32
    scf.if %2 {
      %cst_17 = arith.constant 0.000000e+00 : f32
      %17 = vector.broadcast %cst_17 : f32 to vector<8x8xf32>
      %c0_18 = arith.constant 0 : index
      %c0_19 = arith.constant 0 : index
      %18 = vector.load %arg20[%c0_18, %c0_19] : memref<8x8xf32, #tpu.memory_space<vmem>>, vector<8x8xf32>
      tpu.vector_store %arg20[%c0_18, %c0_19], %17 {strides = array<i32>} : memref<8x8xf32, #tpu.memory_space<vmem>>, vector<8x8xf32>,
      %cst_20 = arith.constant 0.000000e+00 : f32
      %19 = vector.broadcast %cst_20 : f32 to vector<8x32xf32>
      %c0_21 = arith.constant 0 : index
      %c0_22 = arith.constant 0 : index
      %20 = vector.load %arg21[%c0_21, %c0_22] : memref<8x32xf32, #tpu.memory_space<vmem>>, vector<8x32xf32>
      tpu.vector_store %arg21[%c0_21, %c0_22], %19 {strides = array<i32>} : memref<8x32xf32, #tpu.memory_space<vmem>>, vector<8x32xf32>,
    } else {
    }
    %c0 = arith.constant 0 : index
    %c0_1 = arith.constant 0 : index
    %3 = vector.load %arg1[%c0, %c0_1] : memref<8x16xbf16, #tpu.memory_space<vmem>>, vector<8x16xbf16>
    %c0_2 = arith.constant 0 : index
    %c0_3 = arith.constant 0 : index
    %4 = vector.load %arg20[%c0_2, %c0_3] : memref<8x8xf32, #tpu.memory_space<vmem>>, vector<8x8xf32>
    %c0_4 = arith.constant 0 : index
    %c0_5 = arith.constant 0 : index
    %5 = vector.load %arg2[%c0_4, %c0_5] : memref<16x8xbf16, #tpu.memory_space<vmem>>, vector<16x8xbf16>
    %cst = arith.constant dense<0.000000e+00> : vector<8x8xf32>
    %6 = tpu.matmul %3, %5, %cst {dimension_numbers = #tpu.dot_dimension_numbers<[1], [0], [0], [1], [0, 0, 1, 1], [], []>} : vector<8x16xbf16>, vector<16x8xbf16>, vector<8x8xf32> -> vector<8x8xf32>
    %7 = arith.addf %4, %6 : vector<8x8xf32>
    %c0_6 = arith.constant 0 : index
    %c0_7 = arith.constant 0 : index
    %8 = vector.load %arg20[%c0_6, %c0_7] : memref<8x8xf32, #tpu.memory_space<vmem>>, vector<8x8xf32>
    tpu.vector_store %arg20[%c0_6, %c0_7], %7 {strides = array<i32>} : memref<8x8xf32, #tpu.memory_space<vmem>>, vector<8x8xf32>,
    %c0_8 = arith.constant 0 : index
    %c0_9 = arith.constant 0 : index
    %9 = vector.load %arg21[%c0_8, %c0_9] : memref<8x32xf32, #tpu.memory_space<vmem>>, vector<8x32xf32>
    %c0_10 = arith.constant 0 : index
    %c0_11 = arith.constant 0 : index
    %10 = vector.load %arg3[%c0_10, %c0_11] : memref<16x32xbf16, #tpu.memory_space<vmem>>, vector<16x32xbf16>
    %cst_12 = arith.constant dense<0.000000e+00> : vector<8x32xf32>
    %11 = tpu.matmul %3, %10, %cst_12 {dimension_numbers = #tpu.dot_dimension_numbers<[1], [0], [0], [1], [0, 0, 1, 1], [], []>} : vector<8x16xbf16>, vector<16x32xbf16>, vector<8x32xf32> -> vector<8x32xf32>
    %12 = arith.addf %9, %11 : vector<8x32xf32>
    %c0_13 = arith.constant 0 : index
    %c0_14 = arith.constant 0 : index
    %13 = vector.load %arg21[%c0_13, %c0_14] : memref<8x32xf32, #tpu.memory_space<vmem>>, vector<8x32xf32>
    tpu.vector_store %arg21[%c0_13, %c0_14], %12 {strides = array<i32>} : memref<8x32xf32, #tpu.memory_space<vmem>>, vector<8x32xf32>,
    %c0_i32_15 = arith.constant 0 : i32
    %14 = arith.cmpi eq, %arg0, %c0_i32_15 : i32
    %15 = arith.extui %14 : i1 to i32
    %c0_i32_16 = arith.constant 0 : i32
    %16 = arith.cmpi ne, %15, %c0_i32_16 : i32
    scf.if %16 {
      %c0_17 = arith.constant 0 : index
      %17 = memref.load %arg17[%c0_17] : memref<3xf32, #tpu.memory_space<smem>>
      %c1 = arith.constant 1 : index
      %18 = memref.load %arg17[%c1] : memref<3xf32, #tpu.memory_space<smem>>
      %c2 = arith.constant 2 : index
      %19 = memref.load %arg17[%c2] : memref<3xf32, #tpu.memory_space<smem>>
      %cst_18 = arith.constant 1.000000e+00 : f32
      %20 = arith.subf %cst_18, %17 : f32
      %cst_19 = arith.constant 1.000000e+00 : f32
      %21 = arith.subf %cst_19, %18 : f32
      %cst_20 = arith.constant 1.000000e+00 : f32
      %22 = arith.subf %cst_20, %19 : f32
      %c0_21 = arith.constant 0 : index
      %c0_22 = arith.constant 0 : index
      %23 = vector.load %arg20[%c0_21, %c0_22] : memref<8x8xf32, #tpu.memory_space<vmem>>, vector<8x8xf32>
      %c0_23 = arith.constant 0 : index
      %c0_24 = arith.constant 0 : index
      %24 = vector.load %arg21[%c0_23, %c0_24] : memref<8x32xf32, #tpu.memory_space<vmem>>, vector<8x32xf32>
      %c0_25 = arith.constant 0 : index
      %c0_26 = arith.constant 0 : index
      %25 = vector.load %arg4[%c0_25, %c0_26] : memref<1x32xf32, #tpu.memory_space<vmem>>, vector<1x32xf32>
      %26 = vector.broadcast %25 : vector<1x32xf32> to vector<8x32xf32>
      %27 = arith.addf %24, %26 : vector<8x32xf32>
      %cst_27 = arith.constant 0.000000e+00 : f32
      %28 = vector.broadcast %cst_27 : f32 to vector<8x32xf32>
      %29 = arith.maximumf %27, %28 : vector<8x32xf32>
      %30 = arith.truncf %29 : vector<8x32xf32> to vector<8x32xbf16>
      %c0_28 = arith.constant 0 : index
      %c0_29 = arith.constant 0 : index
      %31 = vector.load %arg5[%c0_28, %c0_29] : memref<32x8xbf16, #tpu.memory_space<vmem>>, vector<32x8xbf16>
      %cst_30 = arith.constant dense<0.000000e+00> : vector<8x8xf32>
      %32 = tpu.matmul %30, %31, %cst_30 {dimension_numbers = #tpu.dot_dimension_numbers<[1], [0], [0], [1], [0, 0, 1, 1], [], []>} : vector<8x32xbf16>, vector<32x8xbf16>, vector<8x8xf32> -> vector<8x8xf32>
      %c0_31 = arith.constant 0 : index
      %c0_32 = arith.constant 0 : index
      %33 = vector.load %arg6[%c0_31, %c0_32] : memref<1x8xf32, #tpu.memory_space<vmem>>, vector<1x8xf32>
      %34 = vector.broadcast %33 : vector<1x8xf32> to vector<8x8xf32>
      %35 = arith.addf %32, %34 : vector<8x8xf32>
      %36 = vector.broadcast %20 : f32 to vector<8x8xf32>
      %37 = arith.mulf %36, %35 : vector<8x8xf32>
      %38 = vector.broadcast %17 : f32 to vector<8x8xf32>
      %39 = arith.mulf %38, %23 : vector<8x8xf32>
      %40 = arith.addf %37, %39 : vector<8x8xf32>
      %c0_33 = arith.constant 0 : index
      %c0_34 = arith.constant 0 : index
      %41 = vector.load %arg7[%c0_33, %c0_34] : memref<8x3xf32, #tpu.memory_space<vmem>>, vector<8x3xf32>
      %c0_35 = arith.constant 0 : index
      %c0_36 = arith.constant 0 : index
      %42 = vector.load %arg8[%c0_35, %c0_36] : memref<8x1xf32, #tpu.memory_space<vmem>>, vector<8x1xf32>
      %c0_37 = arith.constant 0 : index
      %c0_38 = arith.constant 0 : index
      %43 = vector.load %arg9[%c0_37, %c0_38] : memref<3x8xf32, #tpu.memory_space<vmem>>, vector<3x8xf32>
      %c0_39 = arith.constant 0 : index
      %c0_40 = arith.constant 0 : index
      %44 = vector.load %arg10[%c0_39, %c0_40] : memref<3x1xf32, #tpu.memory_space<vmem>>, vector<3x1xf32>
      %45 = vector.extract_strided_slice %40 {offsets = [0, 0], sizes = [3, 8], strides = [1, 1]} : vector<8x8xf32> to vector<3x8xf32>
      %cst_41 = arith.constant dense<0.000000e+00> : vector<8x8xf32>
      %46 = tpu.matmul %41, %45, %cst_41 {dimension_numbers = #tpu.dot_dimension_numbers<[1], [0], [0], [1], [0, 0, 1, 1], [], []>} : vector<8x3xf32>, vector<3x8xf32>, vector<8x8xf32> -> vector<8x8xf32>
      %47 = vector.broadcast %42 : vector<8x1xf32> to vector<8x8xf32>
      %48 = arith.addf %46, %47 : vector<8x8xf32>
      %cst_42 = arith.constant 0.000000e+00 : f32
      %49 = vector.broadcast %cst_42 : f32 to vector<8x8xf32>
      %50 = arith.maximumf %48, %49 : vector<8x8xf32>
      %cst_43 = arith.constant dense<0.000000e+00> : vector<3x8xf32>
      %51 = tpu.matmul %43, %50, %cst_43 {dimension_numbers = #tpu.dot_dimension_numbers<[1], [0], [0], [1], [0, 0, 1, 1], [], []>} : vector<3x8xf32>, vector<8x8xf32>, vector<3x8xf32> -> vector<3x8xf32>
      %52 = vector.broadcast %44 : vector<3x1xf32> to vector<3x8xf32>
      %53 = arith.addf %51, %52 : vector<3x8xf32>
      %54 = vector.extract_strided_slice %40 {offsets = [3, 0], sizes = [3, 8], strides = [1, 1]} : vector<8x8xf32> to vector<3x8xf32>
      %cst_44 = arith.constant dense<0.000000e+00> : vector<8x8xf32>
      %55 = tpu.matmul %41, %54, %cst_44 {dimension_numbers = #tpu.dot_dimension_numbers<[1], [0], [0], [1], [0, 0, 1, 1], [], []>} : vector<8x3xf32>, vector<3x8xf32>, vector<8x8xf32> -> vector<8x8xf32>
      %56 = vector.broadcast %42 : vector<8x1xf32> to vector<8x8xf32>
      %57 = arith.addf %55, %56 : vector<8x8xf32>
      %cst_45 = arith.constant 0.000000e+00 : f32
      %58 = vector.broadcast %cst_45 : f32 to vector<8x8xf32>
      %59 = arith.maximumf %57, %58 : vector<8x8xf32>
      %cst_46 = arith.constant dense<0.000000e+00> : vector<3x8xf32>
      %60 = tpu.matmul %43, %59, %cst_46 {dimension_numbers = #tpu.dot_dimension_numbers<[1], [0], [0], [1], [0, 0, 1, 1], [], []>} : vector<3x8xf32>, vector<8x8xf32>, vector<3x8xf32> -> vector<3x8xf32>
      %61 = vector.broadcast %44 : vector<3x1xf32> to vector<3x8xf32>
      %62 = arith.addf %60, %61 : vector<3x8xf32>
      %63 = tpu.concatenate %53, %62 in 0 : vector<3x8xf32>, vector<3x8xf32> -> vector<6x8xf32>
      %cst_47 = arith.constant 0.000000e+00 : f32
      %64 = vector.broadcast %cst_47 : f32 to vector<2x8xf32>
      %65 = tpu.concatenate %63, %64 in 0 : vector<6x8xf32>, vector<2x8xf32> -> vector<8x8xf32>
      %66 = vector.broadcast %21 : f32 to vector<8x8xf32>
      %67 = arith.mulf %66, %65 : vector<8x8xf32>
      %68 = vector.broadcast %18 : f32 to vector<8x8xf32>
      %69 = arith.mulf %68, %23 : vector<8x8xf32>
      %70 = arith.addf %67, %69 : vector<8x8xf32>
      %c0_48 = arith.constant 0 : index
      %c0_49 = arith.constant 0 : index
      %71 = vector.load %arg11[%c0_48, %c0_49] : memref<8x3xf32, #tpu.memory_space<vmem>>, vector<8x3xf32>
      %c0_50 = arith.constant 0 : index
      %c0_51 = arith.constant 0 : index
      %72 = vector.load %arg12[%c0_50, %c0_51] : memref<8x1xf32, #tpu.memory_space<vmem>>, vector<8x1xf32>
      %c0_52 = arith.constant 0 : index
      %c0_53 = arith.constant 0 : index
      %73 = vector.load %arg13[%c0_52, %c0_53] : memref<3x8xf32, #tpu.memory_space<vmem>>, vector<3x8xf32>
      %c0_54 = arith.constant 0 : index
      %c0_55 = arith.constant 0 : index
      %74 = vector.load %arg14[%c0_54, %c0_55] : memref<3x1xf32, #tpu.memory_space<vmem>>, vector<3x1xf32>
      %75 = vector.extract_strided_slice %70 {offsets = [0, 0], sizes = [3, 8], strides = [1, 1]} : vector<8x8xf32> to vector<3x8xf32>
      %cst_56 = arith.constant dense<0.000000e+00> : vector<8x8xf32>
      %76 = tpu.matmul %71, %75, %cst_56 {dimension_numbers = #tpu.dot_dimension_numbers<[1], [0], [0], [1], [0, 0, 1, 1], [], []>} : vector<8x3xf32>, vector<3x8xf32>, vector<8x8xf32> -> vector<8x8xf32>
      %77 = vector.broadcast %72 : vector<8x1xf32> to vector<8x8xf32>
      %78 = arith.addf %76, %77 : vector<8x8xf32>
      %cst_57 = arith.constant 0.000000e+00 : f32
      %79 = vector.broadcast %cst_57 : f32 to vector<8x8xf32>
      %80 = arith.maximumf %78, %79 : vector<8x8xf32>
      %cst_58 = arith.constant dense<0.000000e+00> : vector<3x8xf32>
      %81 = tpu.matmul %73, %80, %cst_58 {dimension_numbers = #tpu.dot_dimension_numbers<[1], [0], [0], [1], [0, 0, 1, 1], [], []>} : vector<3x8xf32>, vector<8x8xf32>, vector<3x8xf32> -> vector<3x8xf32>
      %82 = vector.broadcast %74 : vector<3x1xf32> to vector<3x8xf32>
      %83 = arith.addf %81, %82 : vector<3x8xf32>
      %84 = vector.extract_strided_slice %70 {offsets = [3, 0], sizes = [3, 8], strides = [1, 1]} : vector<8x8xf32> to vector<3x8xf32>
      %cst_59 = arith.constant dense<0.000000e+00> : vector<8x8xf32>
      %85 = tpu.matmul %71, %84, %cst_59 {dimension_numbers = #tpu.dot_dimension_numbers<[1], [0], [0], [1], [0, 0, 1, 1], [], []>} : vector<8x3xf32>, vector<3x8xf32>, vector<8x8xf32> -> vector<8x8xf32>
      %86 = vector.broadcast %72 : vector<8x1xf32> to vector<8x8xf32>
      %87 = arith.addf %85, %86 : vector<8x8xf32>
      %cst_60 = arith.constant 0.000000e+00 : f32
      %88 = vector.broadcast %cst_60 : f32 to vector<8x8xf32>
      %89 = arith.maximumf %87, %88 : vector<8x8xf32>
      %cst_61 = arith.constant dense<0.000000e+00> : vector<3x8xf32>
      %90 = tpu.matmul %73, %89, %cst_61 {dimension_numbers = #tpu.dot_dimension_numbers<[1], [0], [0], [1], [0, 0, 1, 1], [], []>} : vector<3x8xf32>, vector<8x8xf32>, vector<3x8xf32> -> vector<3x8xf32>
      %91 = vector.broadcast %74 : vector<3x1xf32> to vector<3x8xf32>
      %92 = arith.addf %90, %91 : vector<3x8xf32>
      %93 = tpu.concatenate %83, %92 in 0 : vector<3x8xf32>, vector<3x8xf32> -> vector<6x8xf32>
      %cst_62 = arith.constant 0.000000e+00 : f32
      %94 = vector.broadcast %cst_62 : f32 to vector<2x8xf32>
      %95 = tpu.concatenate %93, %94 in 0 : vector<6x8xf32>, vector<2x8xf32> -> vector<8x8xf32>
      %96 = vector.broadcast %22 : f32 to vector<8x8xf32>
      %97 = arith.mulf %96, %95 : vector<8x8xf32>
      %98 = vector.broadcast %19 : f32 to vector<8x8xf32>
      %99 = arith.mulf %98, %70 : vector<8x8xf32>
      %100 = arith.addf %97, %99 : vector<8x8xf32>
      %101 = arith.truncf %100 : vector<8x8xf32> to vector<8x8xbf16>
      %c0_63 = arith.constant 0 : index
      %c0_64 = arith.constant 0 : index
      %102 = vector.load %arg15[%c0_63, %c0_64] : memref<8x32xbf16, #tpu.memory_space<vmem>>, vector<8x32xbf16>
      %cst_65 = arith.constant dense<0.000000e+00> : vector<8x32xf32>
      %103 = tpu.matmul %101, %102, %cst_65 {dimension_numbers = #tpu.dot_dimension_numbers<[1], [0], [0], [1], [0, 0, 1, 1], [], []>} : vector<8x8xbf16>, vector<8x32xbf16>, vector<8x32xf32> -> vector<8x32xf32>
      %c0_66 = arith.constant 0 : index
      %c0_67 = arith.constant 0 : index
      %104 = vector.load %arg16[%c0_66, %c0_67] : memref<1x32xf32, #tpu.memory_space<vmem>>, vector<1x32xf32>
      %105 = vector.broadcast %104 : vector<1x32xf32> to vector<8x32xf32>
      %106 = arith.addf %103, %105 : vector<8x32xf32>
      %cst_68 = arith.constant 0.000000e+00 : f32
      %107 = vector.broadcast %cst_68 : f32 to vector<8x32xf32>
      %108 = arith.maximumf %106, %107 : vector<8x32xf32>
      %109 = arith.truncf %70 : vector<8x8xf32> to vector<8x8xbf16>
      %c0_69 = arith.constant 0 : index
      %c0_70 = arith.constant 0 : index
      %110 = vector.load %arg18[%c0_69, %c0_70] : memref<8x8xbf16, #tpu.memory_space<vmem>>, vector<8x8xbf16>
      tpu.vector_store %arg18[%c0_69, %c0_70], %109 {strides = array<i32>} : memref<8x8xbf16, #tpu.memory_space<vmem>>, vector<8x8xbf16>,
      %111 = arith.truncf %108 : vector<8x32xf32> to vector<8x32xbf16>
      %c0_71 = arith.constant 0 : index
      %c0_72 = arith.constant 0 : index
      %112 = vector.load %arg19[%c0_71, %c0_72] : memref<8x32xbf16, #tpu.memory_space<vmem>>, vector<8x32xbf16>
      tpu.vector_store %arg19[%c0_71, %c0_72], %111 {strides = array<i32>} : memref<8x32xbf16, #tpu.memory_space<vmem>>, vector<8x32xbf16>,
    } else {
    }
    return
  }
  func.func @transform_0(%arg0: i32) -> (i32, i32) {
    %c0_i32 = arith.constant 0 : i32
    %c0_i32_0 = arith.constant 0 : i32
    return %c0_i32, %arg0 : i32, i32
  }
  func.func @transform_1(%arg0: i32) -> (i32, i32) {
    %c0_i32 = arith.constant 0 : i32
    %c0_i32_0 = arith.constant 0 : i32
    return %arg0, %c0_i32 : i32, i32
  }
  func.func @transform_2(%arg0: i32) -> (i32, i32) {
    %c0_i32 = arith.constant 0 : i32
    %c0_i32_0 = arith.constant 0 : i32
    return %arg0, %c0_i32 : i32, i32
  }
  func.func @transform_3(%arg0: i32) -> (i32, i32) {
    %c0_i32 = arith.constant 0 : i32
    %c0_i32_0 = arith.constant 0 : i32
    %c0_i32_1 = arith.constant 0 : i32
    return %c0_i32, %c0_i32_0 : i32, i32
  }
  func.func @transform_4(%arg0: i32) -> (i32, i32) {
    %c0_i32 = arith.constant 0 : i32
    %c0_i32_0 = arith.constant 0 : i32
    %c0_i32_1 = arith.constant 0 : i32
    return %c0_i32, %c0_i32_0 : i32, i32
  }
  func.func @transform_5(%arg0: i32) -> (i32, i32) {
    %c0_i32 = arith.constant 0 : i32
    %c0_i32_0 = arith.constant 0 : i32
    %c0_i32_1 = arith.constant 0 : i32
    return %c0_i32, %c0_i32_0 : i32, i32
  }
  func.func @transform_6(%arg0: i32) -> (i32, i32) {
    %c0_i32 = arith.constant 0 : i32
    %c0_i32_0 = arith.constant 0 : i32
    %c0_i32_1 = arith.constant 0 : i32
    return %c0_i32, %c0_i32_0 : i32, i32
  }
  func.func @transform_7(%arg0: i32) -> (i32, i32) {
    %c0_i32 = arith.constant 0 : i32
    %c0_i32_0 = arith.constant 0 : i32
    %c0_i32_1 = arith.constant 0 : i32
    return %c0_i32, %c0_i32_0 : i32, i32
  }
  func.func @transform_8(%arg0: i32) -> (i32, i32) {
    %c0_i32 = arith.constant 0 : i32
    %c0_i32_0 = arith.constant 0 : i32
    %c0_i32_1 = arith.constant 0 : i32
    return %c0_i32, %c0_i32_0 : i32, i32
  }
  func.func @transform_9(%arg0: i32) -> (i32, i32) {
    %c0_i32 = arith.constant 0 : i32
    %c0_i32_0 = arith.constant 0 : i32
    %c0_i32_1 = arith.constant 0 : i32
    return %c0_i32, %c0_i32_0 : i32, i32
  }
  func.func @transform_10(%arg0: i32) -> (i32, i32) {
    %c0_i32 = arith.constant 0 : i32
    %c0_i32_0 = arith.constant 0 : i32
    %c0_i32_1 = arith.constant 0 : i32
    return %c0_i32, %c0_i32_0 : i32, i32
  }
  func.func @transform_11(%arg0: i32) -> (i32, i32) {
    %c0_i32 = arith.constant 0 : i32
    %c0_i32_0 = arith.constant 0 : i32
    %c0_i32_1 = arith.constant 0 : i32
    return %c0_i32, %c0_i32_0 : i32, i32
  }
  func.func @transform_12(%arg0: i32) -> (i32, i32) {
    %c0_i32 = arith.constant 0 : i32
    %c0_i32_0 = arith.constant 0 : i32
    %c0_i32_1 = arith.constant 0 : i32
    return %c0_i32, %c0_i32_0 : i32, i32
  }
  func.func @transform_13(%arg0: i32) -> (i32, i32) {
    %c0_i32 = arith.constant 0 : i32
    %c0_i32_0 = arith.constant 0 : i32
    %c0_i32_1 = arith.constant 0 : i32
    return %c0_i32, %c0_i32_0 : i32, i32
  }
  func.func @transform_14(%arg0: i32) -> (i32, i32) {
    %c0_i32 = arith.constant 0 : i32
    %c0_i32_0 = arith.constant 0 : i32
    %c0_i32_1 = arith.constant 0 : i32
    return %c0_i32, %c0_i32_0 : i32, i32
  }
  func.func @transform_15(%arg0: i32) -> (i32, i32) {
    %c0_i32 = arith.constant 0 : i32
    %c0_i32_0 = arith.constant 0 : i32
    %c0_i32_1 = arith.constant 0 : i32
    return %c0_i32, %c0_i32_0 : i32, i32
  }
  func.func @transform_16(%arg0: i32) -> i32 {
    %c0_i32 = arith.constant 0 : i32
    %c0_i32_0 = arith.constant 0 : i32
    return %c0_i32 : i32
  }
  func.func @transform_17(%arg0: i32) -> (i32, i32) {
    %c0_i32 = arith.constant 0 : i32
    %c0_i32_0 = arith.constant 0 : i32
    %c0_i32_1 = arith.constant 0 : i32
    return %c0_i32, %c0_i32_0 : i32, i32
  }
  func.func @transform_18(%arg0: i32) -> (i32, i32) {
    %c0_i32 = arith.constant 0 : i32
    %c0_i32_0 = arith.constant 0 : i32
    %c0_i32_1 = arith.constant 0 : i32
    return %c0_i32, %c0_i32_0 : i32, i32
  }
}

module attributes {stable_mosaic.version = 11 : i64} {
  func.func @_decoder_kernel(%arg0: i32, %arg1: memref<8x32xbf16, #tpu.memory_space<vmem>>, %arg2: memref<8x8xbf16, #tpu.memory_space<vmem>>, %arg3: memref<32x16xbf16, #tpu.memory_space<vmem>>, %arg4: memref<1x16xf32, #tpu.memory_space<vmem>>, %arg5: memref<8x16xbf16, #tpu.memory_space<vmem>>, %arg6: memref<1xf32, #tpu.memory_space<smem>>, %arg7: memref<8x16xf32, #tpu.memory_space<vmem>>) attributes {dimension_semantics = [#tpu.dimension_semantics<parallel>], iteration_bounds = array<i64: 1>, scalar_prefetch = 0 : i64, scratch_operands = 0 : i64, tpu.core_type = #tpu.core_type<tc>, window_params = [{pipeline_mode = #tpu.pipeline_mode<synchronous>, transform_indices = @transform_0, window_bounds = array<i64: 8, 32>}, {pipeline_mode = #tpu.pipeline_mode<synchronous>, transform_indices = @transform_1, window_bounds = array<i64: 8, 8>}, {transform_indices = @transform_2, window_bounds = array<i64: 32, 16>}, {transform_indices = @transform_3, window_bounds = array<i64: 1, 16>}, {transform_indices = @transform_4, window_bounds = array<i64: 8, 16>}, {transform_indices = @transform_5, window_bounds = array<i64: 1>}, {transform_indices = @transform_6, window_bounds = array<i64: 8, 16>}]} {
    %c0 = arith.constant 0 : index
    %0 = memref.load %arg6[%c0] : memref<1xf32, #tpu.memory_space<smem>>
    %cst = arith.constant 1.000000e+00 : f32
    %1 = arith.subf %cst, %0 : f32
    %c0_0 = arith.constant 0 : index
    %c0_1 = arith.constant 0 : index
    %2 = vector.load %arg1[%c0_0, %c0_1] : memref<8x32xbf16, #tpu.memory_space<vmem>>, vector<8x32xbf16>
    %c0_2 = arith.constant 0 : index
    %c0_3 = arith.constant 0 : index
    %3 = vector.load %arg3[%c0_2, %c0_3] : memref<32x16xbf16, #tpu.memory_space<vmem>>, vector<32x16xbf16>
    %cst_4 = arith.constant dense<0.000000e+00> : vector<8x16xf32>
    %4 = tpu.matmul %2, %3, %cst_4 {dimension_numbers = #tpu.dot_dimension_numbers<[1], [0], [0], [1], [0, 0, 1, 1], [], []>} : vector<8x32xbf16>, vector<32x16xbf16>, vector<8x16xf32> -> vector<8x16xf32>
    %c0_5 = arith.constant 0 : index
    %c0_6 = arith.constant 0 : index
    %5 = vector.load %arg4[%c0_5, %c0_6] : memref<1x16xf32, #tpu.memory_space<vmem>>, vector<1x16xf32>
    %6 = vector.broadcast %5 : vector<1x16xf32> to vector<8x16xf32>
    %7 = arith.addf %4, %6 : vector<8x16xf32>
    %c0_7 = arith.constant 0 : index
    %c0_8 = arith.constant 0 : index
    %8 = vector.load %arg2[%c0_7, %c0_8] : memref<8x8xbf16, #tpu.memory_space<vmem>>, vector<8x8xbf16>
    %c0_9 = arith.constant 0 : index
    %c0_10 = arith.constant 0 : index
    %9 = vector.load %arg5[%c0_9, %c0_10] : memref<8x16xbf16, #tpu.memory_space<vmem>>, vector<8x16xbf16>
    %cst_11 = arith.constant dense<0.000000e+00> : vector<8x16xf32>
    %10 = tpu.matmul %8, %9, %cst_11 {dimension_numbers = #tpu.dot_dimension_numbers<[1], [0], [0], [1], [0, 0, 1, 1], [], []>} : vector<8x8xbf16>, vector<8x16xbf16>, vector<8x16xf32> -> vector<8x16xf32>
    %11 = vector.broadcast %1 : f32 to vector<8x16xf32>
    %12 = arith.mulf %11, %7 : vector<8x16xf32>
    %13 = vector.broadcast %0 : f32 to vector<8x16xf32>
    %14 = arith.mulf %13, %10 : vector<8x16xf32>
    %15 = arith.addf %12, %14 : vector<8x16xf32>
    %c0_12 = arith.constant 0 : index
    %c0_13 = arith.constant 0 : index
    %16 = vector.load %arg7[%c0_12, %c0_13] : memref<8x16xf32, #tpu.memory_space<vmem>>, vector<8x16xf32>
    tpu.vector_store %arg7[%c0_12, %c0_13], %15 {strides = array<i32>} : memref<8x16xf32, #tpu.memory_space<vmem>>, vector<8x16xf32>,
    return
  }
  func.func @transform_0(%arg0: i32) -> (i32, i32) {
    %c0_i32 = arith.constant 0 : i32
    %c0_i32_0 = arith.constant 0 : i32
    %c0_i32_1 = arith.constant 0 : i32
    return %c0_i32, %c0_i32_0 : i32, i32
  }
  func.func @transform_1(%arg0: i32) -> (i32, i32) {
    %c0_i32 = arith.constant 0 : i32
    %c0_i32_0 = arith.constant 0 : i32
    %c0_i32_1 = arith.constant 0 : i32
    return %c0_i32, %c0_i32_0 : i32, i32
  }
  func.func @transform_2(%arg0: i32) -> (i32, i32) {
    %c0_i32 = arith.constant 0 : i32
    %c0_i32_0 = arith.constant 0 : i32
    return %c0_i32, %arg0 : i32, i32
  }
  func.func @transform_3(%arg0: i32) -> (i32, i32) {
    %c0_i32 = arith.constant 0 : i32
    %c0_i32_0 = arith.constant 0 : i32
    return %c0_i32, %arg0 : i32, i32
  }
  func.func @transform_4(%arg0: i32) -> (i32, i32) {
    %c0_i32 = arith.constant 0 : i32
    %c0_i32_0 = arith.constant 0 : i32
    return %c0_i32, %arg0 : i32, i32
  }
  func.func @transform_5(%arg0: i32) -> i32 {
    %c0_i32 = arith.constant 0 : i32
    %c0_i32_0 = arith.constant 0 : i32
    return %c0_i32 : i32
  }
  func.func @transform_6(%arg0: i32) -> (i32, i32) {
    %c0_i32 = arith.constant 0 : i32
    %c0_i32_0 = arith.constant 0 : i32
    return %c0_i32, %arg0 : i32, i32
  }
}

</mosaic_0001>

<llo_original>
// kernel: sdl_skip_forward.3
$region0: #{sdl_skip_forward.3}
  #allocation0 [shape = 'u32[]', space=smem, size = 0x4, offset = 0x4, fixed_abs, tag = 'smem constant byte address 0x4 - core index']
  #allocation1 [shape = 'u32[144,128]{1,0:T(1,128)}', space=vmem, size = 0x12000, scoped, tag = 'internal scratch']
  #allocation2 [shape = 'f32[1]{0:T(128)S(6)}', space=smem, size = 0x200, scoped, tag = 'scoped memory for sdl_skip_forward.3']
  %s0 = inlined_call_operand.vmem [shape: bf16[8,32], index: 0, kind: input, shape index: {}]
  %s1 = inlined_call_operand.vmem [shape: bf16[8,8], index: 1, kind: input, shape index: {}]
  %s2 = inlined_call_operand.vmem [shape: bf16[32,16], index: 2, kind: input, shape index: {}]
  %s3 = inlined_call_operand.vmem [shape: f32[1,16], index: 3, kind: input, shape index: {}]
  %s4 = inlined_call_operand.vmem [shape: bf16[8,16], index: 4, kind: input, shape index: {}]
  %s5 = inlined_call_operand.<no memory space> [shape: f32[1], index: 5, kind: input, shape index: {}]
  %s6 = inlined_call_operand.vmem [shape: f32[8,16], index: 6, kind: output, shape index: {}]
  %s7 = sld [smem:[#allocation0]]
  $region34: #{sdl_skip_forward.3} parent=0
    _
  %s9 = ssub.s32 1, %s7
  %s10 = scalar_select 0, %s9, %s7
  %11 = sst [smem:[#allocation2]] %s5
  // Predicated region
  $region2: #{sdl_skip_forward.3} parent=0 // pred_check
    _
  $region3: #{sdl_skip_forward.3} parent=0 // pred_check_branch
    %13 = sbr.rel (0) target = $region5
  $region4: #{sdl_skip_forward.3} parent=0 // pred_region
    _
  $region5: #{sdl_skip_forward.3} parent=0 // pred_fallthru
    _
  // Predicated region
  $region6: #{sdl_skip_forward.3} parent=0 // pred_check
    _
  $region7: #{sdl_skip_forward.3} parent=0 // pred_check_branch
    %15 = sbr.rel (0) target = $region9
  $region8: #{sdl_skip_forward.3} parent=0 // pred_region
    _
  $region9: #{sdl_skip_forward.3} parent=0 // pred_fallthru
    _
  // Predicated region
  $region10: #{sdl_skip_forward.3} parent=0 // pred_check
    _
  $region11: #{sdl_skip_forward.3} parent=0 // pred_check_branch
    %17 = sbr.rel (0) target = $region13
  $region12: #{sdl_skip_forward.3} parent=0 // pred_region
    _
  $region13: #{sdl_skip_forward.3} parent=0 // pred_fallthru
    _
  // Predicated region
  $region14: #{sdl_skip_forward.3} parent=0 // pred_check
    _
  $region15: #{sdl_skip_forward.3} parent=0 // pred_check_branch
    %19 = sbr.rel (0) target = $region17
  $region16: #{sdl_skip_forward.3} parent=0 // pred_region
    _
  $region17: #{sdl_skip_forward.3} parent=0 // pred_fallthru
    _
  // Predicated region
  $region18: #{sdl_skip_forward.3} parent=0 // pred_check
    _
  $region19: #{sdl_skip_forward.3} parent=0 // pred_check_branch
    %21 = sbr.rel (0) target = $region21
  $region20: #{sdl_skip_forward.3} parent=0 // pred_region
    _
  $region21: #{sdl_skip_forward.3} parent=0 // pred_fallthru
    _
  // Predicated region
  $region22: #{sdl_skip_forward.3} parent=0 // pred_check
    _
  $region23: #{sdl_skip_forward.3} parent=0 // pred_check_branch
    %23 = sbr.rel (0) target = $region25
  $region24: #{sdl_skip_forward.3} parent=0 // pred_region
    _
  $region25: #{sdl_skip_forward.3} parent=0 // pred_fallthru
    _
  %s25 = sld [smem:[#allocation2]]
  %s26 = ssub.f32 1.0, %s25
  %v27 = vld [vmem:[%s0] sm:$0xf]
  %v28 = vld [vmem:[%s2] sm:$0xf]
  %v29 = vld [vmem:[%s2 + $0x4] sm:$0xf]
  %v30 = vld [vmem:[%s2 + $0x8] sm:$0xf]
  %v31 = vld [vmem:[%s2 + $0xc] sm:$0xf]
  %v32 = vld [vmem:[%s3] sm:$0x1]
  %v34 = vlaneseq
  %v35 = vshrl.u32 %v34, 7
  %v36 = vsub.s32 0, %v35
  %v37 = vrot.slane %v32, %v36
  %v43 = vunpack.c.l.b16 %v28
  %v44 = vunpack.c.l.b16 %v29
  %v45 = vunpack.c.l.b16 %v30
  %v46 = vunpack.c.l.b16 %v31
  %v47 = vpack.c.b16 %v44, %v43
  %v48 = vpack.c.b16 %v46, %v45
  %vm51 = vcmask 261120
  %v53 = vsel %vm51, %v27, 0
  %55 = vmatprep.subr.bf16.mxu0 0
  %56 = vmatpush1.bf16.msra.mxu0 %v47
  %57 = vmatprep.subr.bf16.mxu0 0
  %58 = vmatpush1.bf16.msra.mxu0 %v48
  %59 = vmatprep.subr.bf16.mxu0 0
  %60 = vmatpush1.bf16.msra.mxu0 0
  %61 = vmatprep.subr.bf16.mxu0 0
  %62 = vmatpush1.bf16.msra.mxu0 0
  %63 = vmatprep.subr.bf16.mxu0 0
  %64 = vmatpush1.bf16.msra.mxu0 0
  %65 = vmatprep.subr.bf16.mxu0 0
  %66 = vmatpush1.bf16.msra.mxu0 0
  %67 = vmatprep.subr.bf16.mxu0 0
  %68 = vmatpush1.bf16.msra.mxu0 0
  %69 = vmatprep.subr.bf16.mxu0 0
  %70 = vmatpush1.bf16.msra.mxu0 0
  %71 = vmatprep.subr.bf16.mxu0 0
  %72 = vmatpush1.bf16.msra.mxu0 0
  %73 = vmatprep.subr.bf16.mxu0 0
  %74 = vmatpush1.bf16.msra.mxu0 0
  %75 = vmatprep.subr.bf16.mxu0 0
  %76 = vmatpush1.bf16.msra.mxu0 0
  %77 = vmatprep.subr.bf16.mxu0 0
  %78 = vmatpush1.bf16.msra.mxu0 0
  %79 = vmatprep.subr.bf16.mxu0 0
  %80 = vmatpush1.bf16.msra.mxu0 0
  %81 = vmatprep.subr.bf16.mxu0 0
  %82 = vmatpush1.bf16.msra.mxu0 0
  %83 = vmatprep.subr.bf16.mxu0 0
  %84 = vmatpush1.bf16.msra.mxu0 0
  %85 = vmatprep.subr.bf16.mxu0 0
  %86 = vmatpush1.bf16.msra.mxu0 0
  %87 = vmatprep.mubr.bf16.mxu0 0
  %88 = vmatmul.mubr.bf16.gmra.mrb[0].mxu0 %v53
  %v89 = vpop.f32.mrb[0].mxu0
  %v90 = vadd.f32 %v37, %v89
  %v91 = vpop.f32.mrb[0].mxu0
  %v92 = vpop.f32.mrb[0].mxu0
  %v93 = vpop.f32.mrb[0].mxu0
  %94 = vdwg.mxu0
  %v95 = vld [vmem:[%s1] sm:$0xf]
  %v96 = vld [vmem:[%s4] sm:$0xf]
  %vm97 = vcmask 64512
  %v99 = vsel %vm97, %v95, 0
  %vm101 = vcmask 1043456
  %v103 = vsel %vm101, %v96, 0
  %105 = vmatprep.subr.bf16.mxu0 0
  %106 = vmatpush1.bf16.msra.mxu0 %v103
  %107 = vmatprep.subr.bf16.mxu0 0
  %108 = vmatpush1.bf16.msra.mxu0 0
  %109 = vmatprep.subr.bf16.mxu0 0
  %110 = vmatpush1.bf16.msra.mxu0 0
  %111 = vmatprep.subr.bf16.mxu0 0
  %112 = vmatpush1.bf16.msra.mxu0 0
  %113 = vmatprep.subr.bf16.mxu0 0
  %114 = vmatpush1.bf16.msra.mxu0 0
  %115 = vmatprep.subr.bf16.mxu0 0
  %116 = vmatpush1.bf16.msra.mxu0 0
  %117 = vmatprep.subr.bf16.mxu0 0
  %118 = vmatpush1.bf16.msra.mxu0 0
  %119 = vmatprep.subr.bf16.mxu0 0
  %120 = vmatpush1.bf16.msra.mxu0 0
  %121 = vmatprep.subr.bf16.mxu0 0
  %122 = vmatpush1.bf16.msra.mxu0 0
  %123 = vmatprep.subr.bf16.mxu0 0
  %124 = vmatpush1.bf16.msra.mxu0 0
  %125 = vmatprep.subr.bf16.mxu0 0
  %126 = vmatpush1.bf16.msra.mxu0 0
  %127 = vmatprep.subr.bf16.mxu0 0
  %128 = vmatpush1.bf16.msra.mxu0 0
  %129 = vmatprep.subr.bf16.mxu0 0
  %130 = vmatpush1.bf16.msra.mxu0 0
  %131 = vmatprep.subr.bf16.mxu0 0
  %132 = vmatpush1.bf16.msra.mxu0 0
  %133 = vmatprep.subr.bf16.mxu0 0
  %134 = vmatpush1.bf16.msra.mxu0 0
  %135 = vmatprep.subr.bf16.mxu0 0
  %136 = vmatpush1.bf16.msra.mxu0 0
  %137 = vmatprep.mubr.bf16.mxu0 0
  %138 = vmatmul.mubr.bf16.gmra.mrb[0].mxu0 %v99
  %v139 = vpop.f32.mrb[0].mxu0
  %v140 = vadd.f32 0.0, %v139
  %v141 = vpop.f32.mrb[0].mxu0
  %v142 = vpop.f32.mrb[0].mxu0
  %v143 = vpop.f32.mrb[0].mxu0
  %144 = vdwg.mxu0
  %v145 = vstv %s26
  %v146 = vmul.f32 %v145, %v90
  %v147 = vstv %s25
  %v148 = vmul.f32 %v147, %v140
  %v149 = vadd.f32 %v146, %v148
  %vm150 = vcmask 130048
  %151 = vst.msk [vmem:[%s6] sm:$0xff] %vm150, %v149
  // Predicated region
  $region26: #{sdl_skip_forward.3} parent=0 // pred_check
    _
  $region27: #{sdl_skip_forward.3} parent=0 // pred_check_branch
    %153 = sbr.rel (0) target = $region29
  $region28: #{sdl_skip_forward.3} parent=0 // pred_region
    _
  $region29: #{sdl_skip_forward.3} parent=0 // pred_fallthru
    _
  // Predicated region
  $region30: #{sdl_skip_forward.3} parent=0 // pred_check
    _
  $region31: #{sdl_skip_forward.3} parent=0 // pred_check_branch
    %155 = sbr.rel (0) target = $region33
  $region32: #{sdl_skip_forward.3} parent=0 // pred_region
    _
  $region33: #{sdl_skip_forward.3} parent=0 // pred_fallthru
    _

// kernel: sdl_skip_forward.2
$region0: #{sdl_skip_forward.2}
  #allocation0 [shape = 'u32[]', space=smem, size = 0x4, offset = 0x4, fixed_abs, tag = 'smem constant byte address 0x4 - core index']
  #allocation1 [shape = 'u32[144,128]{1,0:T(1,128)}', space=vmem, size = 0x12000, scoped, tag = 'internal scratch']
  #allocation2 [shape = 'f32[8,8]{1,0:T(8,128)}', space=vmem, size = 0x1000, scoped, tag = 'scratch operand']
  #allocation3 [shape = 'f32[8,32]{1,0:T(8,128)}', space=vmem, size = 0x1000, scoped, tag = 'scratch operand']
  %s0 = inlined_call_operand.vmem [shape: bf16[8,16], index: 0, kind: input, shape index: {}]
  %s1 = inlined_call_operand.vmem [shape: bf16[16,8], index: 1, kind: input, shape index: {}]
  %s2 = inlined_call_operand.vmem [shape: bf16[16,32], index: 2, kind: input, shape index: {}]
  %s3 = inlined_call_operand.vmem [shape: f32[1,32], index: 3, kind: input, shape index: {}]
  %s4 = inlined_call_operand.vmem [shape: bf16[32,8], index: 4, kind: input, shape index: {}]
  %s5 = inlined_call_operand.vmem [shape: f32[1,8], index: 5, kind: input, shape index: {}]
  %s6 = inlined_call_operand.vmem [shape: f32[8,3], index: 6, kind: input, shape index: {}]
  %s7 = inlined_call_operand.vmem [shape: f32[8,1], index: 7, kind: input, shape index: {}]
  %s8 = inlined_call_operand.vmem [shape: f32[3,8], index: 8, kind: input, shape index: {}]
  %s9 = inlined_call_operand.vmem [shape: f32[3,1], index: 9, kind: input, shape index: {}]
  %s10 = inlined_call_operand.vmem [shape: f32[8,3], index: 10, kind: input, shape index: {}]
  %s11 = inlined_call_operand.vmem [shape: f32[8,1], index: 11, kind: input, shape index: {}]
  %s12 = inlined_call_operand.vmem [shape: f32[3,8], index: 12, kind: input, shape index: {}]
  %s13 = inlined_call_operand.vmem [shape: f32[3,1], index: 13, kind: input, shape index: {}]
  %s14 = inlined_call_operand.vmem [shape: bf16[8,32], index: 14, kind: input, shape index: {}]
  %s15 = inlined_call_operand.vmem [shape: f32[1,32], index: 15, kind: input, shape index: {}]
  %s16 = inlined_call_operand.vmem [shape: f32[3], index: 16, kind: input, shape index: {}]
  %s17 = inlined_call_operand.vmem [shape: bf16[8,8], index: 17, kind: output, shape index: {0}]
  %s18 = inlined_call_operand.vmem [shape: bf16[8,32], index: 18, kind: output, shape index: {1}]
  %19 = xla_tuple %s17, %s18
  %s20 = sld [smem:[#allocation0]]
  $region98: #{sdl_skip_forward.2} parent=0
    _
  %s22 = ssub.s32 1, %s20
  %s23 = scalar_select 0, %s22, %s20
  $region1: #{sdl_skip_forward.2} parent=0
    #allocation4 [shape = 'u8[512]{0}', space=smem, size = 0x200, scoped, tag = 'input window, operand 16, single buffered']
    #allocation5 [shape = 's32[1]{0}', space=sflag, size = 0x4, scoped, tag = 'scoped memory for sdl_skip_forward.2']
    %24 = vsyncpa [#allocation5], 0
    // Predicated region
    $region2: #{sdl_skip_forward.2} parent=1 // pred_check
      _
    $region3: #{sdl_skip_forward.2} parent=1 // pred_check_branch
      %26 = sbr.rel (0) target = $region5
    $region4: #{sdl_skip_forward.2} parent=1 // pred_region
      _
    $region5: #{sdl_skip_forward.2} parent=1 // pred_fallthru
      _
    // Predicated region
    $region6: #{sdl_skip_forward.2} parent=1 // pred_check
      _
    $region7: #{sdl_skip_forward.2} parent=1 // pred_check_branch
      %28 = sbr.rel (0) target = $region9
    $region8: #{sdl_skip_forward.2} parent=1 // pred_region
      _
    $region9: #{sdl_skip_forward.2} parent=1 // pred_fallthru
      _
    // Predicated region
    $region10: #{sdl_skip_forward.2} parent=1 // pred_check
      _
    $region11: #{sdl_skip_forward.2} parent=1 // pred_check_branch
      %30 = sbr.rel (0) target = $region13
    $region12: #{sdl_skip_forward.2} parent=1 // pred_region
      _
    $region13: #{sdl_skip_forward.2} parent=1 // pred_fallthru
      _
    // Predicated region
    $region14: #{sdl_skip_forward.2} parent=1 // pred_check
      _
    $region15: #{sdl_skip_forward.2} parent=1 // pred_check_branch
      %32 = sbr.rel (0) target = $region17
    $region16: #{sdl_skip_forward.2} parent=1 // pred_region
      _
    $region17: #{sdl_skip_forward.2} parent=1 // pred_fallthru
      _
    // Predicated region
    $region18: #{sdl_skip_forward.2} parent=1 // pred_check
      _
    $region19: #{sdl_skip_forward.2} parent=1 // pred_check_branch
      %34 = sbr.rel (0) target = $region21
    $region20: #{sdl_skip_forward.2} parent=1 // pred_region
      _
    $region21: #{sdl_skip_forward.2} parent=1 // pred_fallthru
      _
    // Predicated region
    $region22: #{sdl_skip_forward.2} parent=1 // pred_check
      _
    $region23: #{sdl_skip_forward.2} parent=1 // pred_check_branch
      %36 = sbr.rel (0) target = $region25
    $region24: #{sdl_skip_forward.2} parent=1 // pred_region
      _
    $region25: #{sdl_skip_forward.2} parent=1 // pred_fallthru
      _
    // Predicated region
    $region26: #{sdl_skip_forward.2} parent=1 // pred_check
      _
    $region27: #{sdl_skip_forward.2} parent=1 // pred_check_branch
      %38 = sbr.rel (0) target = $region29
    $region28: #{sdl_skip_forward.2} parent=1 // pred_region
      _
    $region29: #{sdl_skip_forward.2} parent=1 // pred_fallthru
      _
    // Predicated region
    $region30: #{sdl_skip_forward.2} parent=1 // pred_check
      _
    $region31: #{sdl_skip_forward.2} parent=1 // pred_check_branch
      %40 = sbr.rel (0) target = $region33
    $region32: #{sdl_skip_forward.2} parent=1 // pred_region
      _
    $region33: #{sdl_skip_forward.2} parent=1 // pred_fallthru
      _
    // Predicated region
    $region34: #{sdl_skip_forward.2} parent=1 // pred_check
      _
    $region35: #{sdl_skip_forward.2} parent=1 // pred_check_branch
      %42 = sbr.rel (0) target = $region37
    $region36: #{sdl_skip_forward.2} parent=1 // pred_region
      _
    $region37: #{sdl_skip_forward.2} parent=1 // pred_fallthru
      _
    // Predicated region
    $region38: #{sdl_skip_forward.2} parent=1 // pred_check
      _
    $region39: #{sdl_skip_forward.2} parent=1 // pred_check_branch
      %44 = sbr.rel (0) target = $region41
    $region40: #{sdl_skip_forward.2} parent=1 // pred_region
      _
    $region41: #{sdl_skip_forward.2} parent=1 // pred_fallthru
      _
    // Predicated region
    $region42: #{sdl_skip_forward.2} parent=1 // pred_check
      _
    $region43: #{sdl_skip_forward.2} parent=1 // pred_check_branch
      %46 = sbr.rel (0) target = $region45
    $region44: #{sdl_skip_forward.2} parent=1 // pred_region
      _
    $region45: #{sdl_skip_forward.2} parent=1 // pred_fallthru
      _
    // Predicated region
    $region46: #{sdl_skip_forward.2} parent=1 // pred_check
      _
    $region47: #{sdl_skip_forward.2} parent=1 // pred_check_branch
      %48 = sbr.rel (0) target = $region49
    $region48: #{sdl_skip_forward.2} parent=1 // pred_region
      _
    $region49: #{sdl_skip_forward.2} parent=1 // pred_fallthru
      _
    // Predicated region
    $region50: #{sdl_skip_forward.2} parent=1 // pred_check
      _
    $region51: #{sdl_skip_forward.2} parent=1 // pred_check_branch
      %50 = sbr.rel (0) target = $region53
    $region52: #{sdl_skip_forward.2} parent=1 // pred_region
      _
    $region53: #{sdl_skip_forward.2} parent=1 // pred_fallthru
      _
    // Predicated region
    $region54: #{sdl_skip_forward.2} parent=1 // pred_check
      _
    $region55: #{sdl_skip_forward.2} parent=1 // pred_check_branch
      %52 = sbr.rel (0) target = $region57
    $region56: #{sdl_skip_forward.2} parent=1 // pred_region
      _
    $region57: #{sdl_skip_forward.2} parent=1 // pred_fallthru
      _
    // Predicated region
    $region58: #{sdl_skip_forward.2} parent=1 // pred_check
      _
    $region59: #{sdl_skip_forward.2} parent=1 // pred_check_branch
      %54 = sbr.rel (0) target = $region61
    $region60: #{sdl_skip_forward.2} parent=1 // pred_region
      _
    $region61: #{sdl_skip_forward.2} parent=1 // pred_fallthru
      _
    // Predicated region
    $region62: #{sdl_skip_forward.2} parent=1 // pred_check
      _
    $region63: #{sdl_skip_forward.2} parent=1 // pred_check_branch
      %56 = sbr.rel (0) target = $region65
    $region64: #{sdl_skip_forward.2} parent=1 // pred_region
      _
    $region65: #{sdl_skip_forward.2} parent=1 // pred_fallthru
      _
    // Predicated region
    $region66: #{sdl_skip_forward.2} parent=1 // pred_check
      _
    $region67: #{sdl_skip_forward.2} parent=1 // pred_check_branch
      %58 = sbr.rel (0) target = $region69
    $region68: #{sdl_skip_forward.2} parent=1 // pred_region
      %s60 = ssub.s32 16, 16
      %61 = vsyncadd [#allocation5], %s60
      %s63 = sshll.u32 %s16, 4
      %s64 = int_to_ptr.vmem [resolvable:$true] %s63
      %66 = dma.vmem_to_smem %s64, 16, [#allocation4], [#allocation5]
    $region69: #{sdl_skip_forward.2} parent=1 // pred_fallthru
      _
    // Predicated region
    $region70: #{sdl_skip_forward.2} parent=1 // pred_check
      _
    $region71: #{sdl_skip_forward.2} parent=1 // pred_check_branch
      %68 = sbr.rel (0) target = $region73
    $region72: #{sdl_skip_forward.2} parent=1 // pred_region
      %69 = dma.done [#allocation5], 16
    $region73: #{sdl_skip_forward.2} parent=1 // pred_fallthru
      _
    %70 = sfence
    %p72 = scmp.eq.s32.totalorder 0, 0
    // Predicated region
    $region74: #{sdl_skip_forward.2} parent=1 // pred_check
      %p73 = pneg %p72
    $region75: #{sdl_skip_forward.2} parent=1 // pred_check_branch
      %75 = sbr.rel (%p73) target = $region77
    $region76: #{sdl_skip_forward.2} parent=1 // pred_region
      %vm76 = vcmask 64512
      %77 = vst.msk [vmem:[#allocation2] sm:$0xff] %vm76, 0.0
      %vm78 = vcmask 261120
      %79 = vst.msk [vmem:[#allocation3] sm:$0xff] %vm78, 0.0
    $region77: #{sdl_skip_forward.2} parent=1 // pred_fallthru
      _
    %v80 = vld [vmem:[%s0] sm:$0xf]
    %v81 = vld [vmem:[#allocation2] sm:$0xff]
    %v82 = vld [vmem:[%s1] sm:$0xf]
    %v83 = vld [vmem:[%s1 + $0x4] sm:$0xf]
    %v86 = vunpack.c.l.b16 %v82
    %v87 = vunpack.c.l.b16 %v83
    %v88 = vpack.c.b16 %v87, %v86
    %vm90 = vcmask 130048
    %v92 = vsel %vm90, %v80, 0
    %94 = vmatprep.subr.bf16.mxu0 0
    %95 = vmatpush1.bf16.msra.mxu0 %v88
    %96 = vmatprep.subr.bf16.mxu0 0
    %97 = vmatpush1.bf16.msra.mxu0 0
    %98 = vmatprep.subr.bf16.mxu0 0
    %99 = vmatpush1.bf16.msra.mxu0 0
    %100 = vmatprep.subr.bf16.mxu0 0
    %101 = vmatpush1.bf16.msra.mxu0 0
    %102 = vmatprep.subr.bf16.mxu0 0
    %103 = vmatpush1.bf16.msra.mxu0 0
    %104 = vmatprep.subr.bf16.mxu0 0
    %105 = vmatpush1.bf16.msra.mxu0 0
    %106 = vmatprep.subr.bf16.mxu0 0
    %107 = vmatpush1.bf16.msra.mxu0 0
    %108 = vmatprep.subr.bf16.mxu0 0
    %109 = vmatpush1.bf16.msra.mxu0 0
    %110 = vmatprep.subr.bf16.mxu0 0
    %111 = vmatpush1.bf16.msra.mxu0 0
    %112 = vmatprep.subr.bf16.mxu0 0
    %113 = vmatpush1.bf16.msra.mxu0 0
    %114 = vmatprep.subr.bf16.mxu0 0
    %115 = vmatpush1.bf16.msra.mxu0 0
    %116 = vmatprep.subr.bf16.mxu0 0
    %117 = vmatpush1.bf16.msra.mxu0 0
    %118 = vmatprep.subr.bf16.mxu0 0
    %119 = vmatpush1.bf16.msra.mxu0 0
    %120 = vmatprep.subr.bf16.mxu0 0
    %121 = vmatpush1.bf16.msra.mxu0 0
    %122 = vmatprep.subr.bf16.mxu0 0
    %123 = vmatpush1.bf16.msra.mxu0 0
    %124 = vmatprep.subr.bf16.mxu0 0
    %125 = vmatpush1.bf16.msra.mxu0 0
    %126 = vmatprep.mubr.bf16.mxu0 0
    %127 = vmatmul.mubr.bf16.gmra.mrb[0].mxu0 %v92
    %v128 = vpop.f32.mrb[0].mxu0
    %v129 = vadd.f32 0.0, %v128
    %v130 = vpop.f32.mrb[0].mxu0
    %v131 = vpop.f32.mrb[0].mxu0
    %v132 = vpop.f32.mrb[0].mxu0
    %133 = vdwg.mxu0
    %v134 = vadd.f32 %v81, %v129
    %vm135 = vcmask 64512
    %136 = vst.msk [vmem:[#allocation2] sm:$0xff] %vm135, %v134
    %v137 = vld [vmem:[#allocation3] sm:$0xff]
    %v138 = vld [vmem:[%s2] sm:$0xf]
    %v139 = vld [vmem:[%s2 + $0x4] sm:$0xf]
    %v142 = vunpack.c.l.b16 %v138
    %v143 = vunpack.c.l.b16 %v139
    %v144 = vpack.c.b16 %v143, %v142
    %146 = vmatprep.subr.bf16.mxu0 0
    %147 = vmatpush1.bf16.msra.mxu0 %v144
    %148 = vmatprep.subr.bf16.mxu0 0
    %149 = vmatpush1.bf16.msra.mxu0 0
    %150 = vmatprep.subr.bf16.mxu0 0
    %151 = vmatpush1.bf16.msra.mxu0 0
    %152 = vmatprep.subr.bf16.mxu0 0
    %153 = vmatpush1.bf16.msra.mxu0 0
    %154 = vmatprep.subr.bf16.mxu0 0
    %155 = vmatpush1.bf16.msra.mxu0 0
    %156 = vmatprep.subr.bf16.mxu0 0
    %157 = vmatpush1.bf16.msra.mxu0 0
    %158 = vmatprep.subr.bf16.mxu0 0
    %159 = vmatpush1.bf16.msra.mxu0 0
    %160 = vmatprep.subr.bf16.mxu0 0
    %161 = vmatpush1.bf16.msra.mxu0 0
    %162 = vmatprep.subr.bf16.mxu0 0
    %163 = vmatpush1.bf16.msra.mxu0 0
    %164 = vmatprep.subr.bf16.mxu0 0
    %165 = vmatpush1.bf16.msra.mxu0 0
    %166 = vmatprep.subr.bf16.mxu0 0
    %167 = vmatpush1.bf16.msra.mxu0 0
    %168 = vmatprep.subr.bf16.mxu0 0
    %169 = vmatpush1.bf16.msra.mxu0 0
    %170 = vmatprep.subr.bf16.mxu0 0
    %171 = vmatpush1.bf16.msra.mxu0 0
    %172 = vmatprep.subr.bf16.mxu0 0
    %173 = vmatpush1.bf16.msra.mxu0 0
    %174 = vmatprep.subr.bf16.mxu0 0
    %175 = vmatpush1.bf16.msra.mxu0 0
    %176 = vmatprep.subr.bf16.mxu0 0
    %177 = vmatpush1.bf16.msra.mxu0 0
    %178 = vmatprep.mubr.bf16.mxu0 0
    %179 = vmatmul.mubr.bf16.gmra.mrb[0].mxu0 %v92
    %v180 = vpop.f32.mrb[0].mxu0
    %v181 = vadd.f32 0.0, %v180
    %v182 = vpop.f32.mrb[0].mxu0
    %v183 = vpop.f32.mrb[0].mxu0
    %v184 = vpop.f32.mrb[0].mxu0
    %185 = vdwg.mxu0
    %v186 = vadd.f32 %v137, %v181
    %vm187 = vcmask 261120
    %188 = vst.msk [vmem:[#allocation3] sm:$0xff] %vm187, %v186
    // Predicated region
    $region78: #{sdl_skip_forward.2} parent=1 // pred_check
      %p189 = pneg %p72
    $region79: #{sdl_skip_forward.2} parent=1 // pred_check_branch
      %191 = sbr.rel (%p189) target = $region81
    $region80: #{sdl_skip_forward.2} parent=1 // pred_region
      %s192 = sld [smem:[#allocation4]]
      %s193 = sld [smem:[#allocation4 + $0x1]]
      %s194 = sld [smem:[#allocation4 + $0x2]]
      %s195 = ssub.f32 1.0, %s192
      %s196 = ssub.f32 1.0, %s193
      %s197 = ssub.f32 1.0, %s194
      %v198 = vld [vmem:[#allocation2] sm:$0xff]
      %v199 = vld [vmem:[#allocation3] sm:$0xff]
      %v200 = vld [vmem:[%s3] sm:$0x1]
      %v202 = vlaneseq
      %v203 = vshrl.u32 %v202, 7
      %v204 = vsub.s32 0, %v203
      %v205 = vrot.slane %v200, %v204
      %v207 = vadd.f32 %v199, %v205
      %v208 = vmax.f32 %v207, 0.0
      %v209 = vpack.c.bf16 %v208, %v208
      %v210 = vld [vmem:[%s4] sm:$0xf]
      %v211 = vld [vmem:[%s4 + $0x4] sm:$0xf]
      %v212 = vld [vmem:[%s4 + $0x8] sm:$0xf]
      %v213 = vld [vmem:[%s4 + $0xc] sm:$0xf]
      %v214 = vld [vmem:[%s5] sm:$0x1]
      %v216 = vlaneseq
      %v217 = vshrl.u32 %v216, 7
      %v218 = vsub.s32 0, %v217
      %v219 = vrot.slane %v214, %v218
      %v225 = vunpack.c.l.b16 %v210
      %v226 = vunpack.c.l.b16 %v211
      %v227 = vunpack.c.l.b16 %v212
      %v228 = vunpack.c.l.b16 %v213
      %v229 = vpack.c.b16 %v226, %v225
      %v230 = vpack.c.b16 %v228, %v227
      %v234 = vsel %vm187, %v209, 0
      %236 = vmatprep.subr.bf16.mxu0 0
      %237 = vmatpush1.bf16.msra.mxu0 %v229
      %238 = vmatprep.subr.bf16.mxu0 0
      %239 = vmatpush1.bf16.msra.mxu0 %v230
      %240 = vmatprep.subr.bf16.mxu0 0
      %241 = vmatpush1.bf16.msra.mxu0 0
      %242 = vmatprep.subr.bf16.mxu0 0
      %243 = vmatpush1.bf16.msra.mxu0 0
      %244 = vmatprep.subr.bf16.mxu0 0
      %245 = vmatpush1.bf16.msra.mxu0 0
      %246 = vmatprep.subr.bf16.mxu0 0
      %247 = vmatpush1.bf16.msra.mxu0 0
      %248 = vmatprep.subr.bf16.mxu0 0
      %249 = vmatpush1.bf16.msra.mxu0 0
      %250 = vmatprep.subr.bf16.mxu0 0
      %251 = vmatpush1.bf16.msra.mxu0 0
      %252 = vmatprep.subr.bf16.mxu0 0
      %253 = vmatpush1.bf16.msra.mxu0 0
      %254 = vmatprep.subr.bf16.mxu0 0
      %255 = vmatpush1.bf16.msra.mxu0 0
      %256 = vmatprep.subr.bf16.mxu0 0
      %257 = vmatpush1.bf16.msra.mxu0 0
      %258 = vmatprep.subr.bf16.mxu0 0
      %259 = vmatpush1.bf16.msra.mxu0 0
      %260 = vmatprep.subr.bf16.mxu0 0
      %261 = vmatpush1.bf16.msra.mxu0 0
      %262 = vmatprep.subr.bf16.mxu0 0
      %263 = vmatpush1.bf16.msra.mxu0 0
      %264 = vmatprep.subr.bf16.mxu0 0
      %265 = vmatpush1.bf16.msra.mxu0 0
      %266 = vmatprep.subr.bf16.mxu0 0
      %267 = vmatpush1.bf16.msra.mxu0 0
      %268 = vmatprep.mubr.bf16.mxu0 0
      %269 = vmatmul.mubr.bf16.gmra.mrb[0].mxu0 %v234
      %v270 = vpop.f32.mrb[0].mxu0
      %v271 = vadd.f32 %v219, %v270
      %v272 = vpop.f32.mrb[0].mxu0
      %v273 = vpop.f32.mrb[0].mxu0
      %v274 = vpop.f32.mrb[0].mxu0
      %275 = vdwg.mxu0
      %v276 = vstv %s195
      %v277 = vmul.f32 %v276, %v271
      %v278 = vstv %s192
      %v279 = vmul.f32 %v278, %v198
      %v280 = vadd.f32 %v277, %v279
      %v281 = vld [vmem:[%s6] sm:$0xff]
      %v282 = vld [vmem:[%s7] sm:$0xff]
      %v283 = vld [vmem:[%s8] sm:$0x7]
      %v284 = vld [vmem:[%s9] sm:$0x7]
      %286 = vset.pattern.permute.xlu0 0
      %287 = vperm.xlu0 %286, %v282
      %v288 = vpop.permute.xlu0 %287
      %vm290 = vcmask 23552
      %v292 = vsel %vm290, %v281, 0
      %vm294 = vcmask 1042432
      %v296 = vsel %vm294, %v280, 0
      %298 = vmatprep.subr.mxu0 0.0
      %299 = vmatpush1.msra.mxu0 %v296
      %300 = vmatprep.subr.mxu0 0.0
      %301 = vmatpush1.msra.mxu0 0.0
      %302 = vmatprep.subr.mxu0 0.0
      %303 = vmatpush1.msra.mxu0 0.0
      %304 = vmatprep.subr.mxu0 0.0
      %305 = vmatpush1.msra.mxu0 0.0
      %306 = vmatprep.subr.mxu0 0.0
      %307 = vmatpush1.msra.mxu0 0.0
      %308 = vmatprep.subr.mxu0 0.0
      %309 = vmatpush1.msra.mxu0 0.0
      %310 = vmatprep.subr.mxu0 0.0
      %311 = vmatpush1.msra.mxu0 0.0
      %312 = vmatprep.subr.mxu0 0.0
      %313 = vmatpush1.msra.mxu0 0.0
      %314 = vmatprep.subr.mxu0 0.0
      %315 = vmatpush1.msra.mxu0 0.0
      %316 = vmatprep.subr.mxu0 0.0
      %317 = vmatpush1.msra.mxu0 0.0
      %318 = vmatprep.subr.mxu0 0.0
      %319 = vmatpush1.msra.mxu0 0.0
      %320 = vmatprep.subr.mxu0 0.0
      %321 = vmatpush1.msra.mxu0 0.0
      %322 = vmatprep.subr.mxu0 0.0
      %323 = vmatpush1.msra.mxu0 0.0
      %324 = vmatprep.subr.mxu0 0.0
      %325 = vmatpush1.msra.mxu0 0.0
      %326 = vmatprep.subr.mxu0 0.0
      %327 = vmatpush1.msra.mxu0 0.0
      %328 = vmatprep.subr.mxu0 0.0
      %329 = vmatpush1.msra.mxu0 0.0
      %330 = vmatprep.subr.mxu0 0.0
      %331 = vmatpush1.msra.mxu0 0.0
      %332 = vmatprep.subr.mxu0 0.0
      %333 = vmatpush1.msra.mxu0 0.0
      %334 = vmatprep.subr.mxu0 0.0
      %335 = vmatpush1.msra.mxu0 0.0
      %336 = vmatprep.subr.mxu0 0.0
      %337 = vmatpush1.msra.mxu0 0.0
      %338 = vmatprep.subr.mxu0 0.0
      %339 = vmatpush1.msra.mxu0 0.0
      %340 = vmatprep.subr.mxu0 0.0
      %341 = vmatpush1.msra.mxu0 0.0
      %342 = vmatprep.subr.mxu0 0.0
      %343 = vmatpush1.msra.mxu0 0.0
      %344 = vmatprep.subr.mxu0 0.0
      %345 = vmatpush1.msra.mxu0 0.0
      %346 = vmatprep.subr.mxu0 0.0
      %347 = vmatpush1.msra.mxu0 0.0
      %348 = vmatprep.subr.mxu0 0.0
      %349 = vmatpush1.msra.mxu0 0.0
      %350 = vmatprep.subr.mxu0 0.0
      %351 = vmatpush1.msra.mxu0 0.0
      %352 = vmatprep.subr.mxu0 0.0
      %353 = vmatpush1.msra.mxu0 0.0
      %354 = vmatprep.subr.mxu0 0.0
      %355 = vmatpush1.msra.mxu0 0.0
      %356 = vmatprep.subr.mxu0 0.0
      %357 = vmatpush1.msra.mxu0 0.0
      %358 = vmatprep.subr.mxu0 0.0
      %359 = vmatpush1.msra.mxu0 0.0
      %360 = vmatprep.subr.mxu0 0.0
      %361 = vmatpush1.msra.mxu0 0.0
      %362 = vmatprep.mubr.f32.mxu0 0.0
      %363 = vmatmul.mubr.f32.gmra.mrb[0].mxu0 %v292
      %v364 = vpop.f32.mrb[0].mxu0
      %v365 = vadd.f32 %v288, %v364
      %v366 = vpop.f32.mrb[0].mxu0
      %367 = vdwg.mxu0
      %v368 = vmax.f32 %v365, 0.0
      %370 = vset.pattern.permute.xlu0 0
      %371 = vperm.xlu0 %370, %v284
      %v372 = vpop.permute.xlu0 %371
      %v375 = vsel %vm135, %v283, 0
      %377 = vmatprep.subr.mxu0 0.0
      %378 = vmatpush1.msra.mxu0 %v368
      %379 = vmatprep.subr.mxu0 0.0
      %380 = vmatpush1.msra.mxu0 0.0
      %381 = vmatprep.subr.mxu0 0.0
      %382 = vmatpush1.msra.mxu0 0.0
      %383 = vmatprep.subr.mxu0 0.0
      %384 = vmatpush1.msra.mxu0 0.0
      %385 = vmatprep.subr.mxu0 0.0
      %386 = vmatpush1.msra.mxu0 0.0
      %387 = vmatprep.subr.mxu0 0.0
      %388 = vmatpush1.msra.mxu0 0.0
      %389 = vmatprep.subr.mxu0 0.0
      %390 = vmatpush1.msra.mxu0 0.0
      %391 = vmatprep.subr.mxu0 0.0
      %392 = vmatpush1.msra.mxu0 0.0
      %393 = vmatprep.subr.mxu0 0.0
      %394 = vmatpush1.msra.mxu0 0.0
      %395 = vmatprep.subr.mxu0 0.0
      %396 = vmatpush1.msra.mxu0 0.0
      %397 = vmatprep.subr.mxu0 0.0
      %398 = vmatpush1.msra.mxu0 0.0
      %399 = vmatprep.subr.mxu0 0.0
      %400 = vmatpush1.msra.mxu0 0.0
      %401 = vmatprep.subr.mxu0 0.0
      %402 = vmatpush1.msra.mxu0 0.0
      %403 = vmatprep.subr.mxu0 0.0
      %404 = vmatpush1.msra.mxu0 0.0
      %405 = vmatprep.subr.mxu0 0.0
      %406 = vmatpush1.msra.mxu0 0.0
      %407 = vmatprep.subr.mxu0 0.0
      %408 = vmatpush1.msra.mxu0 0.0
      %409 = vmatprep.subr.mxu0 0.0
      %410 = vmatpush1.msra.mxu0 0.0
      %411 = vmatprep.subr.mxu0 0.0
      %412 = vmatpush1.msra.mxu0 0.0
      %413 = vmatprep.subr.mxu0 0.0
      %414 = vmatpush1.msra.mxu0 0.0
      %415 = vmatprep.subr.mxu0 0.0
      %416 = vmatpush1.msra.mxu0 0.0
      %417 = vmatprep.subr.mxu0 0.0
      %418 = vmatpush1.msra.mxu0 0.0
      %419 = vmatprep.subr.mxu0 0.0
      %420 = vmatpush1.msra.mxu0 0.0
      %421 = vmatprep.subr.mxu0 0.0
      %422 = vmatpush1.msra.mxu0 0.0
      %423 = vmatprep.subr.mxu0 0.0
      %424 = vmatpush1.msra.mxu0 0.0
      %425 = vmatprep.subr.mxu0 0.0
      %426 = vmatpush1.msra.mxu0 0.0
      %427 = vmatprep.subr.mxu0 0.0
      %428 = vmatpush1.msra.mxu0 0.0
      %429 = vmatprep.subr.mxu0 0.0
      %430 = vmatpush1.msra.mxu0 0.0
      %431 = vmatprep.subr.mxu0 0.0
      %432 = vmatpush1.msra.mxu0 0.0
      %433 = vmatprep.subr.mxu0 0.0
      %434 = vmatpush1.msra.mxu0 0.0
      %435 = vmatprep.subr.mxu0 0.0
      %436 = vmatpush1.msra.mxu0 0.0
      %437 = vmatprep.subr.mxu0 0.0
      %438 = vmatpush1.msra.mxu0 0.0
      %439 = vmatprep.subr.mxu0 0.0
      %440 = vmatpush1.msra.mxu0 0.0
      %441 = vmatprep.mubr.f32.mxu0 0.0
      %442 = vmatmul.mubr.f32.gmra.mrb[0].mxu0 %v375
      %v443 = vpop.f32.mrb[0].mxu0
      %v444 = vadd.f32 %v372, %v443
      %v445 = vpop.f32.mrb[0].mxu0
      %446 = vdwg.mxu0
      %v447 = vrot.slane %v280, 3
      %v448 = vsel %vm294, %v447, 0
      %450 = vmatprep.subr.mxu0 0.0
      %451 = vmatpush1.msra.mxu0 %v448
      %452 = vmatprep.subr.mxu0 0.0
      %453 = vmatpush1.msra.mxu0 0.0
      %454 = vmatprep.subr.mxu0 0.0
      %455 = vmatpush1.msra.mxu0 0.0
      %456 = vmatprep.subr.mxu0 0.0
      %457 = vmatpush1.msra.mxu0 0.0
      %458 = vmatprep.subr.mxu0 0.0
      %459 = vmatpush1.msra.mxu0 0.0
      %460 = vmatprep.subr.mxu0 0.0
      %461 = vmatpush1.msra.mxu0 0.0
      %462 = vmatprep.subr.mxu0 0.0
      %463 = vmatpush1.msra.mxu0 0.0
      %464 = vmatprep.subr.mxu0 0.0
      %465 = vmatpush1.msra.mxu0 0.0
      %466 = vmatprep.subr.mxu0 0.0
      %467 = vmatpush1.msra.mxu0 0.0
      %468 = vmatprep.subr.mxu0 0.0
      %469 = vmatpush1.msra.mxu0 0.0
      %470 = vmatprep.subr.mxu0 0.0
      %471 = vmatpush1.msra.mxu0 0.0
      %472 = vmatprep.subr.mxu0 0.0
      %473 = vmatpush1.msra.mxu0 0.0
      %474 = vmatprep.subr.mxu0 0.0
      %475 = vmatpush1.msra.mxu0 0.0
      %476 = vmatprep.subr.mxu0 0.0
      %477 = vmatpush1.msra.mxu0 0.0
      %478 = vmatprep.subr.mxu0 0.0
      %479 = vmatpush1.msra.mxu0 0.0
      %480 = vmatprep.subr.mxu0 0.0
      %481 = vmatpush1.msra.mxu0 0.0
      %482 = vmatprep.subr.mxu0 0.0
      %483 = vmatpush1.msra.mxu0 0.0
      %484 = vmatprep.subr.mxu0 0.0
      %485 = vmatpush1.msra.mxu0 0.0
      %486 = vmatprep.subr.mxu0 0.0
      %487 = vmatpush1.msra.mxu0 0.0
      %488 = vmatprep.subr.mxu0 0.0
      %489 = vmatpush1.msra.mxu0 0.0
      %490 = vmatprep.subr.mxu0 0.0
      %491 = vmatpush1.msra.mxu0 0.0
      %492 = vmatprep.subr.mxu0 0.0
      %493 = vmatpush1.msra.mxu0 0.0
      %494 = vmatprep.subr.mxu0 0.0
      %495 = vmatpush1.msra.mxu0 0.0
      %496 = vmatprep.subr.mxu0 0.0
      %497 = vmatpush1.msra.mxu0 0.0
      %498 = vmatprep.subr.mxu0 0.0
      %499 = vmatpush1.msra.mxu0 0.0
      %500 = vmatprep.subr.mxu0 0.0
      %501 = vmatpush1.msra.mxu0 0.0
      %502 = vmatprep.subr.mxu0 0.0
      %503 = vmatpush1.msra.mxu0 0.0
      %504 = vmatprep.subr.mxu0 0.0
      %505 = vmatpush1.msra.mxu0 0.0
      %506 = vmatprep.subr.mxu0 0.0
      %507 = vmatpush1.msra.mxu0 0.0
      %508 = vmatprep.subr.mxu0 0.0
      %509 = vmatpush1.msra.mxu0 0.0
      %510 = vmatprep.subr.mxu0 0.0
      %511 = vmatpush1.msra.mxu0 0.0
      %512 = vmatprep.subr.mxu0 0.0
      %513 = vmatpush1.msra.mxu0 0.0
      %514 = vmatprep.mubr.f32.mxu0 0.0
      %515 = vmatmul.mubr.f32.gmra.mrb[0].mxu0 %v292
      %v516 = vpop.f32.mrb[0].mxu0
      %v517 = vadd.f32 %v288, %v516
      %v518 = vpop.f32.mrb[0].mxu0
      %519 = vdwg.mxu0
      %v520 = vmax.f32 %v517, 0.0
      %521 = vmatprep.subr.mxu0 0.0
      %522 = vmatpush1.msra.mxu0 %v520
      %523 = vmatprep.subr.mxu0 0.0
      %524 = vmatpush1.msra.mxu0 0.0
      %525 = vmatprep.subr.mxu0 0.0
      %526 = vmatpush1.msra.mxu0 0.0
      %527 = vmatprep.subr.mxu0 0.0
      %528 = vmatpush1.msra.mxu0 0.0
      %529 = vmatprep.subr.mxu0 0.0
      %530 = vmatpush1.msra.mxu0 0.0
      %531 = vmatprep.subr.mxu0 0.0
      %532 = vmatpush1.msra.mxu0 0.0
      %533 = vmatprep.subr.mxu0 0.0
      %534 = vmatpush1.msra.mxu0 0.0
      %535 = vmatprep.subr.mxu0 0.0
      %536 = vmatpush1.msra.mxu0 0.0
      %537 = vmatprep.subr.mxu0 0.0
      %538 = vmatpush1.msra.mxu0 0.0
      %539 = vmatprep.subr.mxu0 0.0
      %540 = vmatpush1.msra.mxu0 0.0
      %541 = vmatprep.subr.mxu0 0.0
      %542 = vmatpush1.msra.mxu0 0.0
      %543 = vmatprep.subr.mxu0 0.0
      %544 = vmatpush1.msra.mxu0 0.0
      %545 = vmatprep.subr.mxu0 0.0
      %546 = vmatpush1.msra.mxu0 0.0
      %547 = vmatprep.subr.mxu0 0.0
      %548 = vmatpush1.msra.mxu0 0.0
      %549 = vmatprep.subr.mxu0 0.0
      %550 = vmatpush1.msra.mxu0 0.0
      %551 = vmatprep.subr.mxu0 0.0
      %552 = vmatpush1.msra.mxu0 0.0
      %553 = vmatprep.subr.mxu0 0.0
      %554 = vmatpush1.msra.mxu0 0.0
      %555 = vmatprep.subr.mxu0 0.0
      %556 = vmatpush1.msra.mxu0 0.0
      %557 = vmatprep.subr.mxu0 0.0
      %558 = vmatpush1.msra.mxu0 0.0
      %559 = vmatprep.subr.mxu0 0.0
      %560 = vmatpush1.msra.mxu0 0.0
      %561 = vmatprep.subr.mxu0 0.0
      %562 = vmatpush1.msra.mxu0 0.0
      %563 = vmatprep.subr.mxu0 0.0
      %564 = vmatpush1.msra.mxu0 0.0
      %565 = vmatprep.subr.mxu0 0.0
      %566 = vmatpush1.msra.mxu0 0.0
      %567 = vmatprep.subr.mxu0 0.0
      %568 = vmatpush1.msra.mxu0 0.0
      %569 = vmatprep.subr.mxu0 0.0
      %570 = vmatpush1.msra.mxu0 0.0
      %571 = vmatprep.subr.mxu0 0.0
      %572 = vmatpush1.msra.mxu0 0.0
      %573 = vmatprep.subr.mxu0 0.0
      %574 = vmatpush1.msra.mxu0 0.0
      %575 = vmatprep.subr.mxu0 0.0
      %576 = vmatpush1.msra.mxu0 0.0
      %577 = vmatprep.subr.mxu0 0.0
      %578 = vmatpush1.msra.mxu0 0.0
      %579 = vmatprep.subr.mxu0 0.0
      %580 = vmatpush1.msra.mxu0 0.0
      %581 = vmatprep.subr.mxu0 0.0
      %582 = vmatpush1.msra.mxu0 0.0
      %583 = vmatprep.subr.mxu0 0.0
      %584 = vmatpush1.msra.mxu0 0.0
      %585 = vmatprep.mubr.f32.mxu0 0.0
      %586 = vmatmul.mubr.f32.gmra.mrb[0].mxu0 %v375
      %v587 = vpop.f32.mrb[0].mxu0
      %v588 = vadd.f32 %v372, %v587
      %v589 = vpop.f32.mrb[0].mxu0
      %590 = vdwg.mxu0
      %v592 = vrot.slane %v588, 5
      %v594 = vsel %vm294, %v444, %v592
      %vm595 = vcmask 1045504
      %v596 = vsel %vm595, %v594, 0.0
      %v597 = vstv %s196
      %v598 = vmul.f32 %v597, %v596
      %v599 = vstv %s193
      %v600 = vmul.f32 %v599, %v198
      %v601 = vadd.f32 %v598, %v600
      %v602 = vld [vmem:[%s10] sm:$0xff]
      %v603 = vld [vmem:[%s11] sm:$0xff]
      %v604 = vld [vmem:[%s12] sm:$0x7]
      %v605 = vld [vmem:[%s13] sm:$0x7]
      %607 = vset.pattern.permute.xlu0 0
      %608 = vperm.xlu0 %607, %v603
      %v609 = vpop.permute.xlu0 %608
      %v612 = vsel %vm290, %v602, 0
      %v615 = vsel %vm294, %v601, 0
      %617 = vmatprep.subr.mxu0 0.0
      %618 = vmatpush1.msra.mxu0 %v615
      %619 = vmatprep.subr.mxu0 0.0
      %620 = vmatpush1.msra.mxu0 0.0
      %621 = vmatprep.subr.mxu0 0.0
      %622 = vmatpush1.msra.mxu0 0.0
      %623 = vmatprep.subr.mxu0 0.0
      %624 = vmatpush1.msra.mxu0 0.0
      %625 = vmatprep.subr.mxu0 0.0
      %626 = vmatpush1.msra.mxu0 0.0
      %627 = vmatprep.subr.mxu0 0.0
      %628 = vmatpush1.msra.mxu0 0.0
      %629 = vmatprep.subr.mxu0 0.0
      %630 = vmatpush1.msra.mxu0 0.0
      %631 = vmatprep.subr.mxu0 0.0
      %632 = vmatpush1.msra.mxu0 0.0
      %633 = vmatprep.subr.mxu0 0.0
      %634 = vmatpush1.msra.mxu0 0.0
      %635 = vmatprep.subr.mxu0 0.0
      %636 = vmatpush1.msra.mxu0 0.0
      %637 = vmatprep.subr.mxu0 0.0
      %638 = vmatpush1.msra.mxu0 0.0
      %639 = vmatprep.subr.mxu0 0.0
      %640 = vmatpush1.msra.mxu0 0.0
      %641 = vmatprep.subr.mxu0 0.0
      %642 = vmatpush1.msra.mxu0 0.0
      %643 = vmatprep.subr.mxu0 0.0
      %644 = vmatpush1.msra.mxu0 0.0
      %645 = vmatprep.subr.mxu0 0.0
      %646 = vmatpush1.msra.mxu0 0.0
      %647 = vmatprep.subr.mxu0 0.0
      %648 = vmatpush1.msra.mxu0 0.0
      %649 = vmatprep.subr.mxu0 0.0
      %650 = vmatpush1.msra.mxu0 0.0
      %651 = vmatprep.subr.mxu0 0.0
      %652 = vmatpush1.msra.mxu0 0.0
      %653 = vmatprep.subr.mxu0 0.0
      %654 = vmatpush1.msra.mxu0 0.0
      %655 = vmatprep.subr.mxu0 0.0
      %656 = vmatpush1.msra.mxu0 0.0
      %657 = vmatprep.subr.mxu0 0.0
      %658 = vmatpush1.msra.mxu0 0.0
      %659 = vmatprep.subr.mxu0 0.0
      %660 = vmatpush1.msra.mxu0 0.0
      %661 = vmatprep.subr.mxu0 0.0
      %662 = vmatpush1.msra.mxu0 0.0
      %663 = vmatprep.subr.mxu0 0.0
      %664 = vmatpush1.msra.mxu0 0.0
      %665 = vmatprep.subr.mxu0 0.0
      %666 = vmatpush1.msra.mxu0 0.0
      %667 = vmatprep.subr.mxu0 0.0
      %668 = vmatpush1.msra.mxu0 0.0
      %669 = vmatprep.subr.mxu0 0.0
      %670 = vmatpush1.msra.mxu0 0.0
      %671 = vmatprep.subr.mxu0 0.0
      %672 = vmatpush1.msra.mxu0 0.0
      %673 = vmatprep.subr.mxu0 0.0
      %674 = vmatpush1.msra.mxu0 0.0
      %675 = vmatprep.subr.mxu0 0.0
      %676 = vmatpush1.msra.mxu0 0.0
      %677 = vmatprep.subr.mxu0 0.0
      %678 = vmatpush1.msra.mxu0 0.0
      %679 = vmatprep.subr.mxu0 0.0
      %680 = vmatpush1.msra.mxu0 0.0
      %681 = vmatprep.mubr.f32.mxu0 0.0
      %682 = vmatmul.mubr.f32.gmra.mrb[0].mxu0 %v612
      %v683 = vpop.f32.mrb[0].mxu0
      %v684 = vadd.f32 %v609, %v683
      %v685 = vpop.f32.mrb[0].mxu0
      %686 = vdwg.mxu0
      %v687 = vmax.f32 %v684, 0.0
      %689 = vset.pattern.permute.xlu0 0
      %690 = vperm.xlu0 %689, %v605
      %v691 = vpop.permute.xlu0 %690
      %v694 = vsel %vm135, %v604, 0
      %696 = vmatprep.subr.mxu0 0.0
      %697 = vmatpush1.msra.mxu0 %v687
      %698 = vmatprep.subr.mxu0 0.0
      %699 = vmatpush1.msra.mxu0 0.0
      %700 = vmatprep.subr.mxu0 0.0
      %701 = vmatpush1.msra.mxu0 0.0
      %702 = vmatprep.subr.mxu0 0.0
      %703 = vmatpush1.msra.mxu0 0.0
      %704 = vmatprep.subr.mxu0 0.0
      %705 = vmatpush1.msra.mxu0 0.0
      %706 = vmatprep.subr.mxu0 0.0
      %707 = vmatpush1.msra.mxu0 0.0
      %708 = vmatprep.subr.mxu0 0.0
      %709 = vmatpush1.msra.mxu0 0.0
      %710 = vmatprep.subr.mxu0 0.0
      %711 = vmatpush1.msra.mxu0 0.0
      %712 = vmatprep.subr.mxu0 0.0
      %713 = vmatpush1.msra.mxu0 0.0
      %714 = vmatprep.subr.mxu0 0.0
      %715 = vmatpush1.msra.mxu0 0.0
      %716 = vmatprep.subr.mxu0 0.0
      %717 = vmatpush1.msra.mxu0 0.0
      %718 = vmatprep.subr.mxu0 0.0
      %719 = vmatpush1.msra.mxu0 0.0
      %720 = vmatprep.subr.mxu0 0.0
      %721 = vmatpush1.msra.mxu0 0.0
      %722 = vmatprep.subr.mxu0 0.0
      %723 = vmatpush1.msra.mxu0 0.0
      %724 = vmatprep.subr.mxu0 0.0
      %725 = vmatpush1.msra.mxu0 0.0
      %726 = vmatprep.subr.mxu0 0.0
      %727 = vmatpush1.msra.mxu0 0.0
      %728 = vmatprep.subr.mxu0 0.0
      %729 = vmatpush1.msra.mxu0 0.0
      %730 = vmatprep.subr.mxu0 0.0
      %731 = vmatpush1.msra.mxu0 0.0
      %732 = vmatprep.subr.mxu0 0.0
      %733 = vmatpush1.msra.mxu0 0.0
      %734 = vmatprep.subr.mxu0 0.0
      %735 = vmatpush1.msra.mxu0 0.0
      %736 = vmatprep.subr.mxu0 0.0
      %737 = vmatpush1.msra.mxu0 0.0
      %738 = vmatprep.subr.mxu0 0.0
      %739 = vmatpush1.msra.mxu0 0.0
      %740 = vmatprep.subr.mxu0 0.0
      %741 = vmatpush1.msra.mxu0 0.0
      %742 = vmatprep.subr.mxu0 0.0
      %743 = vmatpush1.msra.mxu0 0.0
      %744 = vmatprep.subr.mxu0 0.0
      %745 = vmatpush1.msra.mxu0 0.0
      %746 = vmatprep.subr.mxu0 0.0
      %747 = vmatpush1.msra.mxu0 0.0
      %748 = vmatprep.subr.mxu0 0.0
      %749 = vmatpush1.msra.mxu0 0.0
      %750 = vmatprep.subr.mxu0 0.0
      %751 = vmatpush1.msra.mxu0 0.0
      %752 = vmatprep.subr.mxu0 0.0
      %753 = vmatpush1.msra.mxu0 0.0
      %754 = vmatprep.subr.mxu0 0.0
      %755 = vmatpush1.msra.mxu0 0.0
      %756 = vmatprep.subr.mxu0 0.0
      %757 = vmatpush1.msra.mxu0 0.0
      %758 = vmatprep.subr.mxu0 0.0
      %759 = vmatpush1.msra.mxu0 0.0
      %760 = vmatprep.mubr.f32.mxu0 0.0
      %761 = vmatmul.mubr.f32.gmra.mrb[0].mxu0 %v694
      %v762 = vpop.f32.mrb[0].mxu0
      %v763 = vadd.f32 %v691, %v762
      %v764 = vpop.f32.mrb[0].mxu0
      %765 = vdwg.mxu0
      %v766 = vrot.slane %v601, 3
      %v767 = vsel %vm294, %v766, 0
      %769 = vmatprep.subr.mxu0 0.0
      %770 = vmatpush1.msra.mxu0 %v767
      %771 = vmatprep.subr.mxu0 0.0
      %772 = vmatpush1.msra.mxu0 0.0
      %773 = vmatprep.subr.mxu0 0.0
      %774 = vmatpush1.msra.mxu0 0.0
      %775 = vmatprep.subr.mxu0 0.0
      %776 = vmatpush1.msra.mxu0 0.0
      %777 = vmatprep.subr.mxu0 0.0
      %778 = vmatpush1.msra.mxu0 0.0
      %779 = vmatprep.subr.mxu0 0.0
      %780 = vmatpush1.msra.mxu0 0.0
      %781 = vmatprep.subr.mxu0 0.0
      %782 = vmatpush1.msra.mxu0 0.0
      %783 = vmatprep.subr.mxu0 0.0
      %784 = vmatpush1.msra.mxu0 0.0
      %785 = vmatprep.subr.mxu0 0.0
      %786 = vmatpush1.msra.mxu0 0.0
      %787 = vmatprep.subr.mxu0 0.0
      %788 = vmatpush1.msra.mxu0 0.0
      %789 = vmatprep.subr.mxu0 0.0
      %790 = vmatpush1.msra.mxu0 0.0
      %791 = vmatprep.subr.mxu0 0.0
      %792 = vmatpush1.msra.mxu0 0.0
      %793 = vmatprep.subr.mxu0 0.0
      %794 = vmatpush1.msra.mxu0 0.0
      %795 = vmatprep.subr.mxu0 0.0
      %796 = vmatpush1.msra.mxu0 0.0
      %797 = vmatprep.subr.mxu0 0.0
      %798 = vmatpush1.msra.mxu0 0.0
      %799 = vmatprep.subr.mxu0 0.0
      %800 = vmatpush1.msra.mxu0 0.0
      %801 = vmatprep.subr.mxu0 0.0
      %802 = vmatpush1.msra.mxu0 0.0
      %803 = vmatprep.subr.mxu0 0.0
      %804 = vmatpush1.msra.mxu0 0.0
      %805 = vmatprep.subr.mxu0 0.0
      %806 = vmatpush1.msra.mxu0 0.0
      %807 = vmatprep.subr.mxu0 0.0
      %808 = vmatpush1.msra.mxu0 0.0
      %809 = vmatprep.subr.mxu0 0.0
      %810 = vmatpush1.msra.mxu0 0.0
      %811 = vmatprep.subr.mxu0 0.0
      %812 = vmatpush1.msra.mxu0 0.0
      %813 = vmatprep.subr.mxu0 0.0
      %814 = vmatpush1.msra.mxu0 0.0
      %815 = vmatprep.subr.mxu0 0.0
      %816 = vmatpush1.msra.mxu0 0.0
      %817 = vmatprep.subr.mxu0 0.0
      %818 = vmatpush1.msra.mxu0 0.0
      %819 = vmatprep.subr.mxu0 0.0
      %820 = vmatpush1.msra.mxu0 0.0
      %821 = vmatprep.subr.mxu0 0.0
      %822 = vmatpush1.msra.mxu0 0.0
      %823 = vmatprep.subr.mxu0 0.0
      %824 = vmatpush1.msra.mxu0 0.0
      %825 = vmatprep.subr.mxu0 0.0
      %826 = vmatpush1.msra.mxu0 0.0
      %827 = vmatprep.subr.mxu0 0.0
      %828 = vmatpush1.msra.mxu0 0.0
      %829 = vmatprep.subr.mxu0 0.0
      %830 = vmatpush1.msra.mxu0 0.0
      %831 = vmatprep.subr.mxu0 0.0
      %832 = vmatpush1.msra.mxu0 0.0
      %833 = vmatprep.mubr.f32.mxu0 0.0
      %834 = vmatmul.mubr.f32.gmra.mrb[0].mxu0 %v612
      %v835 = vpop.f32.mrb[0].mxu0
      %v836 = vadd.f32 %v609, %v835
      %v837 = vpop.f32.mrb[0].mxu0
      %838 = vdwg.mxu0
      %v839 = vmax.f32 %v836, 0.0
      %840 = vmatprep.subr.mxu0 0.0
      %841 = vmatpush1.msra.mxu0 %v839
      %842 = vmatprep.subr.mxu0 0.0
      %843 = vmatpush1.msra.mxu0 0.0
      %844 = vmatprep.subr.mxu0 0.0
      %845 = vmatpush1.msra.mxu0 0.0
      %846 = vmatprep.subr.mxu0 0.0
      %847 = vmatpush1.msra.mxu0 0.0
      %848 = vmatprep.subr.mxu0 0.0
      %849 = vmatpush1.msra.mxu0 0.0
      %850 = vmatprep.subr.mxu0 0.0
      %851 = vmatpush1.msra.mxu0 0.0
      %852 = vmatprep.subr.mxu0 0.0
      %853 = vmatpush1.msra.mxu0 0.0
      %854 = vmatprep.subr.mxu0 0.0
      %855 = vmatpush1.msra.mxu0 0.0
      %856 = vmatprep.subr.mxu0 0.0
      %857 = vmatpush1.msra.mxu0 0.0
      %858 = vmatprep.subr.mxu0 0.0
      %859 = vmatpush1.msra.mxu0 0.0
      %860 = vmatprep.subr.mxu0 0.0
      %861 = vmatpush1.msra.mxu0 0.0
      %862 = vmatprep.subr.mxu0 0.0
      %863 = vmatpush1.msra.mxu0 0.0
      %864 = vmatprep.subr.mxu0 0.0
      %865 = vmatpush1.msra.mxu0 0.0
      %866 = vmatprep.subr.mxu0 0.0
      %867 = vmatpush1.msra.mxu0 0.0
      %868 = vmatprep.subr.mxu0 0.0
      %869 = vmatpush1.msra.mxu0 0.0
      %870 = vmatprep.subr.mxu0 0.0
      %871 = vmatpush1.msra.mxu0 0.0
      %872 = vmatprep.subr.mxu0 0.0
      %873 = vmatpush1.msra.mxu0 0.0
      %874 = vmatprep.subr.mxu0 0.0
      %875 = vmatpush1.msra.mxu0 0.0
      %876 = vmatprep.subr.mxu0 0.0
      %877 = vmatpush1.msra.mxu0 0.0
      %878 = vmatprep.subr.mxu0 0.0
      %879 = vmatpush1.msra.mxu0 0.0
      %880 = vmatprep.subr.mxu0 0.0
      %881 = vmatpush1.msra.mxu0 0.0
      %882 = vmatprep.subr.mxu0 0.0
      %883 = vmatpush1.msra.mxu0 0.0
      %884 = vmatprep.subr.mxu0 0.0
      %885 = vmatpush1.msra.mxu0 0.0
      %886 = vmatprep.subr.mxu0 0.0
      %887 = vmatpush1.msra.mxu0 0.0
      %888 = vmatprep.subr.mxu0 0.0
      %889 = vmatpush1.msra.mxu0 0.0
      %890 = vmatprep.subr.mxu0 0.0
      %891 = vmatpush1.msra.mxu0 0.0
      %892 = vmatprep.subr.mxu0 0.0
      %893 = vmatpush1.msra.mxu0 0.0
      %894 = vmatprep.subr.mxu0 0.0
      %895 = vmatpush1.msra.mxu0 0.0
      %896 = vmatprep.subr.mxu0 0.0
      %897 = vmatpush1.msra.mxu0 0.0
      %898 = vmatprep.subr.mxu0 0.0
      %899 = vmatpush1.msra.mxu0 0.0
      %900 = vmatprep.subr.mxu0 0.0
      %901 = vmatpush1.msra.mxu0 0.0
      %902 = vmatprep.subr.mxu0 0.0
      %903 = vmatpush1.msra.mxu0 0.0
      %904 = vmatprep.mubr.f32.mxu0 0.0
      %905 = vmatmul.mubr.f32.gmra.mrb[0].mxu0 %v694
      %v906 = vpop.f32.mrb[0].mxu0
      %v907 = vadd.f32 %v691, %v906
      %v908 = vpop.f32.mrb[0].mxu0
      %909 = vdwg.mxu0
      %v911 = vrot.slane %v907, 5
      %v913 = vsel %vm294, %v763, %v911
      %v914 = vsel %vm595, %v913, 0.0
      %v915 = vstv %s197
      %v916 = vmul.f32 %v915, %v914
      %v917 = vstv %s194
      %v918 = vmul.f32 %v917, %v601
      %v919 = vadd.f32 %v916, %v918
      %v920 = vpack.c.bf16 %v919, %v919
      %v921 = vld [vmem:[%s14] sm:$0xf]
      %v922 = vld [vmem:[%s15] sm:$0x1]
      %v924 = vlaneseq
      %v925 = vshrl.u32 %v924, 7
      %v926 = vsub.s32 0, %v925
      %v927 = vrot.slane %v922, %v926
      %v930 = vsel %vm135, %v920, 0
      %vm932 = vcmask 1043456
      %v934 = vsel %vm932, %v921, 0
      %936 = vmatprep.subr.bf16.mxu0 0
      %937 = vmatpush1.bf16.msra.mxu0 %v934
      %938 = vmatprep.subr.bf16.mxu0 0
      %939 = vmatpush1.bf16.msra.mxu0 0
      %940 = vmatprep.subr.bf16.mxu0 0
      %941 = vmatpush1.bf16.msra.mxu0 0
      %942 = vmatprep.subr.bf16.mxu0 0
      %943 = vmatpush1.bf16.msra.mxu0 0
      %944 = vmatprep.subr.bf16.mxu0 0
      %945 = vmatpush1.bf16.msra.mxu0 0
      %946 = vmatprep.subr.bf16.mxu0 0
      %947 = vmatpush1.bf16.msra.mxu0 0
      %948 = vmatprep.subr.bf16.mxu0 0
      %949 = vmatpush1.bf16.msra.mxu0 0
      %950 = vmatprep.subr.bf16.mxu0 0
      %951 = vmatpush1.bf16.msra.mxu0 0
      %952 = vmatprep.subr.bf16.mxu0 0
      %953 = vmatpush1.bf16.msra.mxu0 0
      %954 = vmatprep.subr.bf16.mxu0 0
      %955 = vmatpush1.bf16.msra.mxu0 0
      %956 = vmatprep.subr.bf16.mxu0 0
      %957 = vmatpush1.bf16.msra.mxu0 0
      %958 = vmatprep.subr.bf16.mxu0 0
      %959 = vmatpush1.bf16.msra.mxu0 0
      %960 = vmatprep.subr.bf16.mxu0 0
      %961 = vmatpush1.bf16.msra.mxu0 0
      %962 = vmatprep.subr.bf16.mxu0 0
      %963 = vmatpush1.bf16.msra.mxu0 0
      %964 = vmatprep.subr.bf16.mxu0 0
      %965 = vmatpush1.bf16.msra.mxu0 0
      %966 = vmatprep.subr.bf16.mxu0 0
      %967 = vmatpush1.bf16.msra.mxu0 0
      %968 = vmatprep.mubr.bf16.mxu0 0
      %969 = vmatmul.mubr.bf16.gmra.mrb[0].mxu0 %v930
      %v970 = vpop.f32.mrb[0].mxu0
      %v971 = vadd.f32 %v927, %v970
      %v972 = vpop.f32.mrb[0].mxu0
      %v973 = vpop.f32.mrb[0].mxu0
      %v974 = vpop.f32.mrb[0].mxu0
      %975 = vdwg.mxu0
      %v976 = vmax.f32 %v971, 0.0
      %v977 = vpack.c.bf16 %v601, %v601
      %vm978 = vcmask 60416
      %979 = vst.msk [vmem:[%s17] sm:$0xf] %vm978, %v977
      %v980 = vpack.c.bf16 %v976, %v976
      %vm981 = vcmask 257024
      %982 = vst.msk [vmem:[%s18] sm:$0xf] %vm981, %v980
    $region81: #{sdl_skip_forward.2} parent=1 // pred_fallthru
      _
    // Predicated region
    $region82: #{sdl_skip_forward.2} parent=1 // pred_check
      _
    $region83: #{sdl_skip_forward.2} parent=1 // pred_check_branch
      %984 = sbr.rel (0) target = $region85
    $region84: #{sdl_skip_forward.2} parent=1 // pred_region
      _
    $region85: #{sdl_skip_forward.2} parent=1 // pred_fallthru
      _
    // Predicated region
    $region86: #{sdl_skip_forward.2} parent=1 // pred_check
      _
    $region87: #{sdl_skip_forward.2} parent=1 // pred_check_branch
      %986 = sbr.rel (0) target = $region89
    $region88: #{sdl_skip_forward.2} parent=1 // pred_region
      _
    $region89: #{sdl_skip_forward.2} parent=1 // pred_fallthru
      _
    // Predicated region
    $region90: #{sdl_skip_forward.2} parent=1 // pred_check
      _
    $region91: #{sdl_skip_forward.2} parent=1 // pred_check_branch
      %988 = sbr.rel (0) target = $region93
    $region92: #{sdl_skip_forward.2} parent=1 // pred_region
      _
    $region93: #{sdl_skip_forward.2} parent=1 // pred_fallthru
      _
    // Predicated region
    $region94: #{sdl_skip_forward.2} parent=1 // pred_check
      _
    $region95: #{sdl_skip_forward.2} parent=1 // pred_check_branch
      %990 = sbr.rel (0) target = $region97
    $region96: #{sdl_skip_forward.2} parent=1 // pred_region
      _
    $region97: #{sdl_skip_forward.2} parent=1 // pred_fallthru
      _
    %991 = vsyncpa [#allocation5], 1

</llo_original>
